<compile_context>
chip_gen: v6e
topology: v6e:2x2x1
jax: 0.10.0
libtpu: 0.0.40
codegen_flags: <defaults>
</compile_context>

<pallas_src>
import functools

import jax
import jax.numpy as jnp
from jax.experimental import pallas as pl
from jax.experimental.pallas import tpu as pltpu


def _round_up(x, m):
    return (x + m - 1) // m * m


# ----------------------------------------------------------------------------
# Fused multi-layer Pallas kernel (single block, all layers in VMEM)
# ----------------------------------------------------------------------------
def _fused_graphsage_kernel(a_ref, x_ref, rmask_ref, *rest,
                            n_layers, din_pads, dout_pads):
    """All SAGE(mean) layers [+BN(eval)+ReLU] in one kernel.

    rest = (W_0, scale_0, shift_0, ..., W_{L-1}, scale_{L-1}, shift_{L-1},
            o_ref, cat_ref)
    The resident H is aliased into the left half of cat_ref (no separate
    h_ref scratch, no per-layer H store/reload).
    """
    o_ref = rest[3 * n_layers]
    cat_ref = rest[3 * n_layers + 1]

    a = a_ref[...]                                  # bf16 [Np, Np]
    rmask = rmask_ref[...]                          # f32  [Np, 1]  (1 = real row)

    # H^(0) lives in the left half of the concat scratch.
    cat_ref[:, :din_pads[0]] = x_ref[...]

    for l in range(n_layers):                       # static (unrolled) layer loop
        dk = din_pads[l]
        w_ref = rest[3 * l]
        sc_ref = rest[3 * l + 1]
        sh_ref = rest[3 * l + 2]

        h = cat_ref[:, :dk]                         # bf16 [Np, dk]
        # mean aggregation (A is row-normalized): agg = A @ H, f32 accumulate
        agg = jnp.dot(a, h, preferred_element_type=jnp.float32)
        cat_ref[:, dk:2 * dk] = agg.astype(jnp.bfloat16)

        # One wide-K MXU matmul: [H | A@H] @ [W_self ; W_neigh]
        out = jnp.dot(cat_ref[:, :2 * dk], w_ref[...],
                      preferred_element_type=jnp.float32)   # f32 [Np, dout_pad]

        # bias + eval-mode BatchNorm1d folded into one affine (f32 VPU);
        # padded node rows masked so they stay exactly zero.
        out = (out * sc_ref[...] + sh_ref[...]) * rmask
        if l != n_layers - 1:
            out = jnp.maximum(out, 0.0)             # ReLU
            # TODO(synk): Dropout is identity in eval mode; training-mode
            # dropout (pltpu.prng_random_bits mask) is not emitted here.
            cat_ref[:, :dout_pads[l]] = out.astype(jnp.bfloat16)
        else:
            o_ref[...] = out


def graphsage_forward(A, x, params):
    """Full fused forward pass: one pallas_call for all layers."""
    n_layers = len(params)
    N, in_feats = x.shape
    dims = [in_feats] + [p["W_self"].shape[1] for p in params]
    din_pads = tuple(_round_up(d, 128) for d in dims[:-1])
    dout_pads = tuple(_round_up(d, 128) for d in dims[1:])
    max_din = max(din_pads)
    n_pad = _round_up(N, 128)   # bf16 sublane tile + full MXU depth for A@H

    # Pad graph + features; cast MXU inputs to bf16 (f32 accumulation inside).
    A_p = jnp.zeros((n_pad, n_pad), jnp.float32).at[:N, :N].set(A)
    A_p = A_p.astype(jnp.bfloat16)
    x_p = jnp.zeros((n_pad, din_pads[0]), jnp.float32).at[:N, :in_feats].set(x)
    x_p = x_p.astype(jnp.bfloat16)
    rmask = (jnp.arange(n_pad) < N).astype(jnp.float32).reshape(n_pad, 1)

    def full(shape):
        return pl.BlockSpec(shape, lambda: (0,) * len(shape))

    # Per-layer padded params (layer loop is statically unrolled in-kernel).
    layer_args, layer_specs = [], []
    for l, p in enumerate(params):
        din, dout = p["W_self"].shape
        dkp, dnp_ = din_pads[l], dout_pads[l]
        w_cat = jnp.zeros((2 * dkp, dnp_), jnp.float32)
        w_cat = w_cat.at[:din, :dout].set(p["W_self"])
        w_cat = w_cat.at[dkp:dkp + din, :dout].set(p["W_neigh"])

        if l != n_layers - 1:
            scale = p["bn_scale"]
            shift = p["bn_shift"] + p["bias"] * scale   # fold bias into shift
        else:
            scale = jnp.ones((dout,), jnp.float32)
            shift = p["bias"]
        sc = jnp.zeros((1, dnp_), jnp.float32).at[0, :dout].set(scale)
        sh = jnp.zeros((1, dnp_), jnp.float32).at[0, :dout].set(shift)

        layer_args += [w_cat.astype(jnp.bfloat16), sc, sh]
        layer_specs += [full((2 * dkp, dnp_)), full((1, dnp_)), full((1, dnp_))]

    # Explicit VMEM budget (A + x + mask + params + out + concat scratch),
    # with 2x slack, clamped to v7x's 64 MiB physical VMEM.
    vmem_needed = (
        A_p.size * 2 + x_p.size * 2 + n_pad * 128 * 4
        + sum(a.size * a.dtype.itemsize for a in layer_args)
        + n_pad * dout_pads[-1] * 4            # f32 output
        + n_pad * 2 * max_din * 2)             # bf16 [H | A@H] scratch
    vmem_limit = int(min(64 * 2**20, max(2 * vmem_needed, 8 * 2**20)))

    flops = sum(2 * n_pad * n_pad * din_pads[l]                 # A @ H
                + 2 * n_pad * (2 * din_pads[l]) * dout_pads[l]  # cat @ W
                for l in range(n_layers))
    bytes_accessed = (A_p.size * 2 + x_p.size * 2 + rmask.size * 4
                      + sum(a.size * a.dtype.itemsize for a in layer_args)
                      + n_pad * dout_pads[-1] * 4)

    kernel = functools.partial(_fused_graphsage_kernel, n_layers=n_layers,
                               din_pads=din_pads, dout_pads=dout_pads)

    # TODO(synk): for N where A (n_pad^2 * 2B) no longer fits VMEM, switch to a
    # row-tiled grid over A/out with per-layer ping-pong H buffers (or a sparse
    # neighbor-index gather via PrefetchScalarGridSpec num_scalar_prefetch=1);
    # a "parallel" row axis additionally needs cross-core sync because every
    # layer consumes all rows of the previous one.
    out_p = pl.pallas_call(
        kernel,
        out_shape=jax.ShapeDtypeStruct((n_pad, dout_pads[-1]), jnp.float32),
        grid_spec=pltpu.PrefetchScalarGridSpec(
            num_scalar_prefetch=0,
            grid=(),   # whole padded problem fits in VMEM as single blocks
            in_specs=[full((n_pad, n_pad)),         # A (bf16)
                      full((n_pad, din_pads[0])),   # x (bf16, padded)
                      full((n_pad, 1)),             # row mask (f32)
                      ] + layer_specs,              # per-layer W / scale / shift
            out_specs=full((n_pad, dout_pads[-1])),
            scratch_shapes=[
                pltpu.VMEM((n_pad, 2 * max_din), jnp.bfloat16),  # [H | A@H]
            ]),
        compiler_params=pltpu.CompilerParams(
            dimension_semantics=(), vmem_limit_bytes=vmem_limit),
        cost_estimate=pl.CostEstimate(flops=flops, transcendentals=0,
                                      bytes_accessed=bytes_accessed),
    )(A_p, x_p, rmask, *layer_args)

    n_classes = dims[-1]
    return out_p[:N, :n_classes]


# ----------------------------------------------------------------------------
# Parameter setup / graph construction / pure-JAX reference (plain glue)
# ----------------------------------------------------------------------------
def init_params(key, in_feats, n_hidden, n_classes, n_layers):
    dims = [in_feats] + [n_hidden] * (n_layers - 1) + [n_classes]
    params = []
    for l in range(n_layers):
        din, dout = dims[l], dims[l + 1]
        key, k1, k2, k3 = jax.random.split(key, 4)
        layer = {
            "W_self": 0.1 * jax.random.normal(k1, (din, dout), jnp.float32),
            "W_neigh": 0.1 * jax.random.normal(k2, (din, dout), jnp.float32),
            "bias": 0.01 * jax.random.normal(k3, (dout,), jnp.float32),
        }
        if l != n_layers - 1:
            # BatchNorm1d eval-mode fold: gamma=1, beta=0, mean=0, var=1
            eps = 1e-5
            gamma = jnp.ones((dout,), jnp.float32)
            beta = jnp.zeros((dout,), jnp.float32)
            running_mean = jnp.zeros((dout,), jnp.float32)
            running_var = jnp.ones((dout,), jnp.float32)
            scale = gamma / jnp.sqrt(running_var + eps)
            layer["bn_scale"] = scale
            layer["bn_shift"] = beta - running_mean * scale
        params.append(layer)
    return params


def build_graph(key, n_nodes, avg_degree=8):
    """Deterministic random graph -> dense row-normalized adjacency [N, N]."""
    p = avg_degree / n_nodes
    adj = (jax.random.uniform(key, (n_nodes, n_nodes)) < p).astype(jnp.float32)
    adj = adj * (1.0 - jnp.eye(n_nodes, dtype=jnp.float32))  # no self loops
    deg = jnp.maximum(adj.sum(axis=1, keepdims=True), 1.0)
    return adj / deg                                          # mean aggregation


def graphsage_reference(A, x, params):
    """Pure-JAX f32 reference (matches PyTorch eval-mode semantics)."""
    h = x
    n_layers = len(params)
    for l, p in enumerate(params):
        agg = A @ h
        out = h @ p["W_self"] + agg @ p["W_neigh"] + p["bias"]
        if l != n_layers - 1:
            out = out * p["bn_scale"] + p["bn_shift"]
            out = jnp.maximum(out, 0.0)
        h = out
    return h


if __name__ == "__main__":
    N = 128          # nodes
    in_feats = 32
    n_hidden = 64
    n_classes = 16
    n_layers = 3

    key = jax.random.PRNGKey(0)
    k_graph, k_feat, k_params = jax.random.split(key, 3)

    A = build_graph(k_graph, N)
    x = jax.random.normal(k_feat, (N, in_feats), jnp.float32)
    params = init_params(k_params, in_feats, n_hidden, n_classes, n_layers)

    out = graphsage_forward(A, x, params)
    out = jax.block_until_ready(out)

    assert out.shape == (N, n_classes)
    assert jnp.all(jnp.isfinite(out))

    ref = graphsage_reference(A, x, params)
    # bf16 MXU inputs with f32 accumulation -> small drift vs f32 reference.
    assert jnp.allclose(out, ref, rtol=5e-2, atol=5e-2), \
        float(jnp.max(jnp.abs(out - ref)))

    print("KERNEL_OK")
</pallas_src>

<mosaic_0001>
module attributes {stable_mosaic.version = 11 : i64} {
  func.func @_fused_graphsage_kernel(%arg0: memref<128x128xbf16, #tpu.memory_space<vmem>>, %arg1: memref<128x128xbf16, #tpu.memory_space<vmem>>, %arg2: memref<128x1xf32, #tpu.memory_space<vmem>>, %arg3: memref<256x128xbf16, #tpu.memory_space<vmem>>, %arg4: memref<1x128xf32, #tpu.memory_space<vmem>>, %arg5: memref<1x128xf32, #tpu.memory_space<vmem>>, %arg6: memref<256x128xbf16, #tpu.memory_space<vmem>>, %arg7: memref<1x128xf32, #tpu.memory_space<vmem>>, %arg8: memref<1x128xf32, #tpu.memory_space<vmem>>, %arg9: memref<256x128xbf16, #tpu.memory_space<vmem>>, %arg10: memref<1x128xf32, #tpu.memory_space<vmem>>, %arg11: memref<1x128xf32, #tpu.memory_space<vmem>>, %arg12: memref<128x128xf32, #tpu.memory_space<vmem>>, %arg13: memref<128x256xbf16, #tpu.memory_space<vmem>>) attributes {dimension_semantics = [], scalar_prefetch = 0 : i64, scratch_operands = 1 : i64, tpu.core_type = #tpu.core_type<tc>} {
    %c0 = arith.constant 0 : index
    %c0_0 = arith.constant 0 : index
    %0 = vector.load %arg0[%c0, %c0_0] : memref<128x128xbf16, #tpu.memory_space<vmem>>, vector<128x128xbf16>
    %c0_1 = arith.constant 0 : index
    %c0_2 = arith.constant 0 : index
    %1 = vector.load %arg2[%c0_1, %c0_2] : memref<128x1xf32, #tpu.memory_space<vmem>>, vector<128x1xf32>
    %c0_3 = arith.constant 0 : index
    %c0_4 = arith.constant 0 : index
    %2 = vector.load %arg1[%c0_3, %c0_4] : memref<128x128xbf16, #tpu.memory_space<vmem>>, vector<128x128xbf16>
    %c0_5 = arith.constant 0 : index
    %c0_6 = arith.constant 0 : index
    %3 = vector.load %arg13[%c0_5, %c0_6] : memref<128x256xbf16, #tpu.memory_space<vmem>>, vector<128x128xbf16>
    tpu.vector_store %arg13[%c0_5, %c0_6], %2 {strides = array<i32>} : memref<128x256xbf16, #tpu.memory_space<vmem>>, vector<128x128xbf16>,
    %c0_7 = arith.constant 0 : index
    %c0_8 = arith.constant 0 : index
    %4 = vector.load %arg13[%c0_7, %c0_8] : memref<128x256xbf16, #tpu.memory_space<vmem>>, vector<128x128xbf16>
    %cst = arith.constant dense<0.000000e+00> : vector<128x128xf32>
    %5 = tpu.matmul %0, %4, %cst {dimension_numbers = #tpu.dot_dimension_numbers<[1], [0], [0], [1], [0, 0, 1, 1], [], []>} : vector<128x128xbf16>, vector<128x128xbf16>, vector<128x128xf32> -> vector<128x128xf32>
    %6 = arith.truncf %5 : vector<128x128xf32> to vector<128x128xbf16>
    %c0_9 = arith.constant 0 : index
    %c128 = arith.constant 128 : index
    %7 = vector.load %arg13[%c0_9, %c128] : memref<128x256xbf16, #tpu.memory_space<vmem>>, vector<128x128xbf16>
    tpu.vector_store %arg13[%c0_9, %c128], %6 {strides = array<i32>} : memref<128x256xbf16, #tpu.memory_space<vmem>>, vector<128x128xbf16>,
    %c0_10 = arith.constant 0 : index
    %c0_11 = arith.constant 0 : index
    %8 = vector.load %arg13[%c0_10, %c0_11] : memref<128x256xbf16, #tpu.memory_space<vmem>>, vector<128x256xbf16>
    %c0_12 = arith.constant 0 : index
    %c0_13 = arith.constant 0 : index
    %9 = vector.load %arg3[%c0_12, %c0_13] : memref<256x128xbf16, #tpu.memory_space<vmem>>, vector<256x128xbf16>
    %cst_14 = arith.constant dense<0.000000e+00> : vector<128x128xf32>
    %10 = tpu.matmul %8, %9, %cst_14 {dimension_numbers = #tpu.dot_dimension_numbers<[1], [0], [0], [1], [0, 0, 1, 1], [], []>} : vector<128x256xbf16>, vector<256x128xbf16>, vector<128x128xf32> -> vector<128x128xf32>
    %c0_15 = arith.constant 0 : index
    %c0_16 = arith.constant 0 : index
    %11 = vector.load %arg4[%c0_15, %c0_16] : memref<1x128xf32, #tpu.memory_space<vmem>>, vector<1x128xf32>
    %12 = vector.broadcast %11 : vector<1x128xf32> to vector<128x128xf32>
    %13 = arith.mulf %10, %12 : vector<128x128xf32>
    %c0_17 = arith.constant 0 : index
    %c0_18 = arith.constant 0 : index
    %14 = vector.load %arg5[%c0_17, %c0_18] : memref<1x128xf32, #tpu.memory_space<vmem>>, vector<1x128xf32>
    %15 = vector.broadcast %14 : vector<1x128xf32> to vector<128x128xf32>
    %16 = arith.addf %13, %15 : vector<128x128xf32>
    %17 = vector.broadcast %1 : vector<128x1xf32> to vector<128x128xf32>
    %18 = arith.mulf %16, %17 : vector<128x128xf32>
    %cst_19 = arith.constant 0.000000e+00 : f32
    %19 = vector.broadcast %cst_19 : f32 to vector<128x128xf32>
    %20 = arith.maximumf %18, %19 : vector<128x128xf32>
    %21 = arith.truncf %20 : vector<128x128xf32> to vector<128x128xbf16>
    %c0_20 = arith.constant 0 : index
    %c0_21 = arith.constant 0 : index
    %22 = vector.load %arg13[%c0_20, %c0_21] : memref<128x256xbf16, #tpu.memory_space<vmem>>, vector<128x128xbf16>
    tpu.vector_store %arg13[%c0_20, %c0_21], %21 {strides = array<i32>} : memref<128x256xbf16, #tpu.memory_space<vmem>>, vector<128x128xbf16>,
    %c0_22 = arith.constant 0 : index
    %c0_23 = arith.constant 0 : index
    %23 = vector.load %arg13[%c0_22, %c0_23] : memref<128x256xbf16, #tpu.memory_space<vmem>>, vector<128x128xbf16>
    %cst_24 = arith.constant dense<0.000000e+00> : vector<128x128xf32>
    %24 = tpu.matmul %0, %23, %cst_24 {dimension_numbers = #tpu.dot_dimension_numbers<[1], [0], [0], [1], [0, 0, 1, 1], [], []>} : vector<128x128xbf16>, vector<128x128xbf16>, vector<128x128xf32> -> vector<128x128xf32>
    %25 = arith.truncf %24 : vector<128x128xf32> to vector<128x128xbf16>
    %c0_25 = arith.constant 0 : index
    %c128_26 = arith.constant 128 : index
    %26 = vector.load %arg13[%c0_25, %c128_26] : memref<128x256xbf16, #tpu.memory_space<vmem>>, vector<128x128xbf16>
    tpu.vector_store %arg13[%c0_25, %c128_26], %25 {strides = array<i32>} : memref<128x256xbf16, #tpu.memory_space<vmem>>, vector<128x128xbf16>,
    %c0_27 = arith.constant 0 : index
    %c0_28 = arith.constant 0 : index
    %27 = vector.load %arg13[%c0_27, %c0_28] : memref<128x256xbf16, #tpu.memory_space<vmem>>, vector<128x256xbf16>
    %c0_29 = arith.constant 0 : index
    %c0_30 = arith.constant 0 : index
    %28 = vector.load %arg6[%c0_29, %c0_30] : memref<256x128xbf16, #tpu.memory_space<vmem>>, vector<256x128xbf16>
    %cst_31 = arith.constant dense<0.000000e+00> : vector<128x128xf32>
    %29 = tpu.matmul %27, %28, %cst_31 {dimension_numbers = #tpu.dot_dimension_numbers<[1], [0], [0], [1], [0, 0, 1, 1], [], []>} : vector<128x256xbf16>, vector<256x128xbf16>, vector<128x128xf32> -> vector<128x128xf32>
    %c0_32 = arith.constant 0 : index
    %c0_33 = arith.constant 0 : index
    %30 = vector.load %arg7[%c0_32, %c0_33] : memref<1x128xf32, #tpu.memory_space<vmem>>, vector<1x128xf32>
    %31 = vector.broadcast %30 : vector<1x128xf32> to vector<128x128xf32>
    %32 = arith.mulf %29, %31 : vector<128x128xf32>
    %c0_34 = arith.constant 0 : index
    %c0_35 = arith.constant 0 : index
    %33 = vector.load %arg8[%c0_34, %c0_35] : memref<1x128xf32, #tpu.memory_space<vmem>>, vector<1x128xf32>
    %34 = vector.broadcast %33 : vector<1x128xf32> to vector<128x128xf32>
    %35 = arith.addf %32, %34 : vector<128x128xf32>
    %36 = vector.broadcast %1 : vector<128x1xf32> to vector<128x128xf32>
    %37 = arith.mulf %35, %36 : vector<128x128xf32>
    %cst_36 = arith.constant 0.000000e+00 : f32
    %38 = vector.broadcast %cst_36 : f32 to vector<128x128xf32>
    %39 = arith.maximumf %37, %38 : vector<128x128xf32>
    %40 = arith.truncf %39 : vector<128x128xf32> to vector<128x128xbf16>
    %c0_37 = arith.constant 0 : index
    %c0_38 = arith.constant 0 : index
    %41 = vector.load %arg13[%c0_37, %c0_38] : memref<128x256xbf16, #tpu.memory_space<vmem>>, vector<128x128xbf16>
    tpu.vector_store %arg13[%c0_37, %c0_38], %40 {strides = array<i32>} : memref<128x256xbf16, #tpu.memory_space<vmem>>, vector<128x128xbf16>,
    %c0_39 = arith.constant 0 : index
    %c0_40 = arith.constant 0 : index
    %42 = vector.load %arg13[%c0_39, %c0_40] : memref<128x256xbf16, #tpu.memory_space<vmem>>, vector<128x128xbf16>
    %cst_41 = arith.constant dense<0.000000e+00> : vector<128x128xf32>
    %43 = tpu.matmul %0, %42, %cst_41 {dimension_numbers = #tpu.dot_dimension_numbers<[1], [0], [0], [1], [0, 0, 1, 1], [], []>} : vector<128x128xbf16>, vector<128x128xbf16>, vector<128x128xf32> -> vector<128x128xf32>
    %44 = arith.truncf %43 : vector<128x128xf32> to vector<128x128xbf16>
    %c0_42 = arith.constant 0 : index
    %c128_43 = arith.constant 128 : index
    %45 = vector.load %arg13[%c0_42, %c128_43] : memref<128x256xbf16, #tpu.memory_space<vmem>>, vector<128x128xbf16>
    tpu.vector_store %arg13[%c0_42, %c128_43], %44 {strides = array<i32>} : memref<128x256xbf16, #tpu.memory_space<vmem>>, vector<128x128xbf16>,
    %c0_44 = arith.constant 0 : index
    %c0_45 = arith.constant 0 : index
    %46 = vector.load %arg13[%c0_44, %c0_45] : memref<128x256xbf16, #tpu.memory_space<vmem>>, vector<128x256xbf16>
    %c0_46 = arith.constant 0 : index
    %c0_47 = arith.constant 0 : index
    %47 = vector.load %arg9[%c0_46, %c0_47] : memref<256x128xbf16, #tpu.memory_space<vmem>>, vector<256x128xbf16>
    %cst_48 = arith.constant dense<0.000000e+00> : vector<128x128xf32>
    %48 = tpu.matmul %46, %47, %cst_48 {dimension_numbers = #tpu.dot_dimension_numbers<[1], [0], [0], [1], [0, 0, 1, 1], [], []>} : vector<128x256xbf16>, vector<256x128xbf16>, vector<128x128xf32> -> vector<128x128xf32>
    %c0_49 = arith.constant 0 : index
    %c0_50 = arith.constant 0 : index
    %49 = vector.load %arg10[%c0_49, %c0_50] : memref<1x128xf32, #tpu.memory_space<vmem>>, vector<1x128xf32>
    %50 = vector.broadcast %49 : vector<1x128xf32> to vector<128x128xf32>
    %51 = arith.mulf %48, %50 : vector<128x128xf32>
    %c0_51 = arith.constant 0 : index
    %c0_52 = arith.constant 0 : index
    %52 = vector.load %arg11[%c0_51, %c0_52] : memref<1x128xf32, #tpu.memory_space<vmem>>, vector<1x128xf32>
    %53 = vector.broadcast %52 : vector<1x128xf32> to vector<128x128xf32>
    %54 = arith.addf %51, %53 : vector<128x128xf32>
    %55 = vector.broadcast %1 : vector<128x1xf32> to vector<128x128xf32>
    %56 = arith.mulf %54, %55 : vector<128x128xf32>
    %c0_53 = arith.constant 0 : index
    %c0_54 = arith.constant 0 : index
    %57 = vector.load %arg12[%c0_53, %c0_54] : memref<128x128xf32, #tpu.memory_space<vmem>>, vector<128x128xf32>
    tpu.vector_store %arg12[%c0_53, %c0_54], %56 {strides = array<i32>} : memref<128x128xf32, #tpu.memory_space<vmem>>, vector<128x128xf32>,
    return
  }
}

</mosaic_0001>

<llo_original>
// kernel: tpu_custom_call.1
$region0: #{tpu_custom_call.1}
  #allocation0 [shape = 'u32[]', space=smem, size = 0x4, offset = 0x4, fixed_abs, tag = 'smem constant byte address 0x4 - core index']
  #allocation1 [shape = 'u32[144,128]{1,0:T(1,128)}', space=vmem, size = 0x12000, scoped, tag = 'internal scratch']
  #allocation2 [shape = 'bf16[128,256]{1,0:T(8,128)(2,1)}', space=vmem, size = 0x10000, scoped, tag = 'scratch operand']
  %s0 = inlined_call_operand.hbm [shape: bf16[128,128], index: 0, kind: input, shape index: {}]
  %s1 = inlined_call_operand.hbm [shape: bf16[128,128], index: 1, kind: input, shape index: {}]
  %s2 = inlined_call_operand.vmem [shape: f32[128,1], index: 2, kind: input, shape index: {}]
  %s3 = inlined_call_operand.vmem [shape: bf16[256,128], index: 3, kind: input, shape index: {}]
  %s4 = inlined_call_operand.vmem [shape: f32[1,128], index: 4, kind: input, shape index: {}]
  %s5 = inlined_call_operand.vmem [shape: f32[1,128], index: 5, kind: input, shape index: {}]
  %s6 = inlined_call_operand.hbm [shape: bf16[256,128], index: 6, kind: input, shape index: {}]
  %s7 = inlined_call_operand.vmem [shape: f32[1,128], index: 7, kind: input, shape index: {}]
  %s8 = inlined_call_operand.vmem [shape: f32[1,128], index: 8, kind: input, shape index: {}]
  %s9 = inlined_call_operand.hbm [shape: bf16[256,128], index: 9, kind: input, shape index: {}]
  %s10 = inlined_call_operand.vmem [shape: f32[1,128], index: 10, kind: input, shape index: {}]
  %s11 = inlined_call_operand.vmem [shape: f32[1,128], index: 11, kind: input, shape index: {}]
  %s12 = inlined_call_operand.hbm [shape: f32[128,128], index: 12, kind: output, shape index: {}]
  %s13 = sld [smem:[#allocation0]]
  $region74: #{tpu_custom_call.1} parent=0
    _
  %s15 = ssub.s32 1, %s13
  %s16 = scalar_select 0, %s15, %s13
  $region1: #{tpu_custom_call.1} parent=0
    #allocation3 [shape = 'u8[32768]{0}', space=vmem, size = 0x8000, scoped, tag = 'input window, operand 0, single buffered']
    #allocation4 [shape = 's32[1]{0}', space=sflag, size = 0x4, scoped, tag = 'scoped memory for tpu_custom_call.1']
    #allocation5 [shape = 's32[1]{0}', space=sflag, size = 0x4, scoped, tag = 'scoped memory for tpu_custom_call.1']
    #allocation6 [shape = 'u8[32768]{0}', space=vmem, size = 0x8000, scoped, tag = 'input window, operand 1, single buffered']
    #allocation7 [shape = 's32[1]{0}', space=sflag, size = 0x4, scoped, tag = 'scoped memory for tpu_custom_call.1']
    #allocation8 [shape = 'u8[65536]{0}', space=vmem, size = 0x10000, scoped, tag = 'input window, operand 6, single buffered']
    #allocation9 [shape = 'u8[65536]{0}', space=vmem, size = 0x10000, scoped, tag = 'input window, operand 9, single buffered']
    #allocation10 [shape = 's32[1]{0}', space=sflag, size = 0x4, scoped, tag = 'scoped memory for tpu_custom_call.1']
    #allocation11 [shape = 'u8[65536]{0}', space=vmem, size = 0x10000, scoped, tag = 'output window, operand 0, single buffered']
    %17 = vsyncpa [#allocation4], 0
    %18 = vsyncpa [#allocation7], 0
    %19 = vsyncpa [#allocation10], 0
    %20 = vsyncpa [#allocation5], 0
    // Predicated region
    $region2: #{tpu_custom_call.1} parent=1 // pred_check
      _
    $region3: #{tpu_custom_call.1} parent=1 // pred_check_branch
      %22 = sbr.rel (0) target = $region5
    $region4: #{tpu_custom_call.1} parent=1 // pred_region
      %s24 = ssub.s32 1024, 1024
      %25 = vsyncadd [#allocation4], %s24
      %s26 = sshll.u32 [#allocation3], 4
      %s27 = int_to_ptr.vmem [resolvable:$true] %s26
      %32 = dma.hbm_to_vmem [thread:$0]  %s0, 1024, %s27, [#allocation4], 64, 64, 4
    $region5: #{tpu_custom_call.1} parent=1 // pred_fallthru
      _
    // Predicated region
    $region6: #{tpu_custom_call.1} parent=1 // pred_check
      _
    $region7: #{tpu_custom_call.1} parent=1 // pred_check_branch
      %34 = sbr.rel (0) target = $region9
    $region8: #{tpu_custom_call.1} parent=1 // pred_region
      %s36 = ssub.s32 1024, 1024
      %37 = vsyncadd [#allocation7], %s36
      %s38 = sshll.u32 [#allocation6], 4
      %s39 = int_to_ptr.vmem [resolvable:$true] %s38
      %44 = dma.hbm_to_vmem [thread:$0]  %s1, 1024, %s39, [#allocation7], 64, 64, 4
    $region9: #{tpu_custom_call.1} parent=1 // pred_fallthru
      _
    // Predicated region
    $region10: #{tpu_custom_call.1} parent=1 // pred_check
      _
    $region11: #{tpu_custom_call.1} parent=1 // pred_check_branch
      %46 = sbr.rel (0) target = $region13
    $region12: #{tpu_custom_call.1} parent=1 // pred_region
      _
    $region13: #{tpu_custom_call.1} parent=1 // pred_fallthru
      _
    // Predicated region
    $region14: #{tpu_custom_call.1} parent=1 // pred_check
      _
    $region15: #{tpu_custom_call.1} parent=1 // pred_check_branch
      %48 = sbr.rel (0) target = $region17
    $region16: #{tpu_custom_call.1} parent=1 // pred_region
      _
    $region17: #{tpu_custom_call.1} parent=1 // pred_fallthru
      _
    // Predicated region
    $region18: #{tpu_custom_call.1} parent=1 // pred_check
      _
    $region19: #{tpu_custom_call.1} parent=1 // pred_check_branch
      %50 = sbr.rel (0) target = $region21
    $region20: #{tpu_custom_call.1} parent=1 // pred_region
      _
    $region21: #{tpu_custom_call.1} parent=1 // pred_fallthru
      _
    // Predicated region
    $region22: #{tpu_custom_call.1} parent=1 // pred_check
      _
    $region23: #{tpu_custom_call.1} parent=1 // pred_check_branch
      %52 = sbr.rel (0) target = $region25
    $region24: #{tpu_custom_call.1} parent=1 // pred_region
      _
    $region25: #{tpu_custom_call.1} parent=1 // pred_fallthru
      _
    // Predicated region
    $region26: #{tpu_custom_call.1} parent=1 // pred_check
      _
    $region27: #{tpu_custom_call.1} parent=1 // pred_check_branch
      %54 = sbr.rel (0) target = $region29
    $region28: #{tpu_custom_call.1} parent=1 // pred_region
      %s56 = ssub.s32 2048, 2048
      %57 = vsyncadd [#allocation7], %s56
      %s58 = sshll.u32 [#allocation8], 4
      %s59 = int_to_ptr.vmem [resolvable:$true] %s58
      %64 = dma.hbm_to_vmem [thread:$0]  %s6, 2048, %s59, [#allocation7], 64, 64, 4
    $region29: #{tpu_custom_call.1} parent=1 // pred_fallthru
      _
    // Predicated region
    $region30: #{tpu_custom_call.1} parent=1 // pred_check
      _
    $region31: #{tpu_custom_call.1} parent=1 // pred_check_branch
      %66 = sbr.rel (0) target = $region33
    $region32: #{tpu_custom_call.1} parent=1 // pred_region
      _
    $region33: #{tpu_custom_call.1} parent=1 // pred_fallthru
      _
    // Predicated region
    $region34: #{tpu_custom_call.1} parent=1 // pred_check
      _
    $region35: #{tpu_custom_call.1} parent=1 // pred_check_branch
      %68 = sbr.rel (0) target = $region37
    $region36: #{tpu_custom_call.1} parent=1 // pred_region
      _
    $region37: #{tpu_custom_call.1} parent=1 // pred_fallthru
      _
    // Predicated region
    $region38: #{tpu_custom_call.1} parent=1 // pred_check
      _
    $region39: #{tpu_custom_call.1} parent=1 // pred_check_branch
      %70 = sbr.rel (0) target = $region41
    $region40: #{tpu_custom_call.1} parent=1 // pred_region
      %s72 = ssub.s32 2048, 2048
      %73 = vsyncadd [#allocation10], %s72
      %s74 = sshll.u32 [#allocation9], 4
      %s75 = int_to_ptr.vmem [resolvable:$true] %s74
      %80 = dma.hbm_to_vmem [thread:$0]  %s9, 2048, %s75, [#allocation10], 64, 64, 4
    $region41: #{tpu_custom_call.1} parent=1 // pred_fallthru
      _
    // Predicated region
    $region42: #{tpu_custom_call.1} parent=1 // pred_check
      _
    $region43: #{tpu_custom_call.1} parent=1 // pred_check_branch
      %82 = sbr.rel (0) target = $region45
    $region44: #{tpu_custom_call.1} parent=1 // pred_region
      _
    $region45: #{tpu_custom_call.1} parent=1 // pred_fallthru
      _
    // Predicated region
    $region46: #{tpu_custom_call.1} parent=1 // pred_check
      _
    $region47: #{tpu_custom_call.1} parent=1 // pred_check_branch
      %84 = sbr.rel (0) target = $region49
    $region48: #{tpu_custom_call.1} parent=1 // pred_region
      _
    $region49: #{tpu_custom_call.1} parent=1 // pred_fallthru
      _
    // Predicated region
    $region50: #{tpu_custom_call.1} parent=1 // pred_check
      _
    $region51: #{tpu_custom_call.1} parent=1 // pred_check_branch
      %86 = sbr.rel (0) target = $region53
    $region52: #{tpu_custom_call.1} parent=1 // pred_region
      %87 = dma.done [#allocation4], 1024
    $region53: #{tpu_custom_call.1} parent=1 // pred_fallthru
      _
    // Predicated region
    $region54: #{tpu_custom_call.1} parent=1 // pred_check
      _
    $region55: #{tpu_custom_call.1} parent=1 // pred_check_branch
      %89 = sbr.rel (0) target = $region57
    $region56: #{tpu_custom_call.1} parent=1 // pred_region
      %90 = dma.done [#allocation7], 1024
    $region57: #{tpu_custom_call.1} parent=1 // pred_fallthru
      _
    // Predicated region
    $region58: #{tpu_custom_call.1} parent=1 // pred_check
      _
    $region59: #{tpu_custom_call.1} parent=1 // pred_check_branch
      %92 = sbr.rel (0) target = $region61
    $region60: #{tpu_custom_call.1} parent=1 // pred_region
      %93 = dma.done [#allocation7], 2048
    $region61: #{tpu_custom_call.1} parent=1 // pred_fallthru
      _
    // Predicated region
    $region62: #{tpu_custom_call.1} parent=1 // pred_check
      _
    $region63: #{tpu_custom_call.1} parent=1 // pred_check_branch
      %95 = sbr.rel (0) target = $region65
    $region64: #{tpu_custom_call.1} parent=1 // pred_region
      %96 = dma.done [#allocation10], 2048
    $region65: #{tpu_custom_call.1} parent=1 // pred_fallthru
      _
    %v98 = vld [vmem:[#allocation3] sm:$0xf]
    %v99 = vld [vmem:[#allocation3 + $0x4] sm:$0xf]
    %v100 = vld [vmem:[#allocation3 + $0x8] sm:$0xf]
    %v101 = vld [vmem:[#allocation3 + $0xc] sm:$0xf]
    %v102 = vld [vmem:[#allocation3 + $0x10] sm:$0xf]
    %v103 = vld [vmem:[#allocation3 + $0x14] sm:$0xf]
    %v104 = vld [vmem:[#allocation3 + $0x18] sm:$0xf]
    %v105 = vld [vmem:[#allocation3 + $0x1c] sm:$0xf]
    %v106 = vld [vmem:[#allocation3 + $0x20] sm:$0xf]
    %v107 = vld [vmem:[#allocation3 + $0x24] sm:$0xf]
    %v108 = vld [vmem:[#allocation3 + $0x28] sm:$0xf]
    %v109 = vld [vmem:[#allocation3 + $0x2c] sm:$0xf]
    %v110 = vld [vmem:[#allocation3 + $0x30] sm:$0xf]
    %v111 = vld [vmem:[#allocation3 + $0x34] sm:$0xf]
    %v112 = vld [vmem:[#allocation3 + $0x38] sm:$0xf]
    %v113 = vld [vmem:[#allocation3 + $0x3c] sm:$0xf]
    %v114 = vld [vmem:[%s2] sm:$0xff]
    %v115 = vld [vmem:[%s2 + $0x8] sm:$0xff]
    %v116 = vld [vmem:[%s2 + $0x10] sm:$0xff]
    %v117 = vld [vmem:[%s2 + $0x18] sm:$0xff]
    %v118 = vld [vmem:[%s2 + $0x20] sm:$0xff]
    %v119 = vld [vmem:[%s2 + $0x28] sm:$0xff]
    %v120 = vld [vmem:[%s2 + $0x30] sm:$0xff]
    %v121 = vld [vmem:[%s2 + $0x38] sm:$0xff]
    %v122 = vld [vmem:[%s2 + $0x40] sm:$0xff]
    %v123 = vld [vmem:[%s2 + $0x48] sm:$0xff]
    %v124 = vld [vmem:[%s2 + $0x50] sm:$0xff]
    %v125 = vld [vmem:[%s2 + $0x58] sm:$0xff]
    %v126 = vld [vmem:[%s2 + $0x60] sm:$0xff]
    %v127 = vld [vmem:[%s2 + $0x68] sm:$0xff]
    %v128 = vld [vmem:[%s2 + $0x70] sm:$0xff]
    %v129 = vld [vmem:[%s2 + $0x78] sm:$0xff]
    %v130 = vld [vmem:[#allocation6] sm:$0xf]
    %v131 = vld [vmem:[#allocation6 + $0x4] sm:$0xf]
    %v132 = vld [vmem:[#allocation6 + $0x8] sm:$0xf]
    %v133 = vld [vmem:[#allocation6 + $0xc] sm:$0xf]
    %v134 = vld [vmem:[#allocation6 + $0x10] sm:$0xf]
    %v135 = vld [vmem:[#allocation6 + $0x14] sm:$0xf]
    %v136 = vld [vmem:[#allocation6 + $0x18] sm:$0xf]
    %v137 = vld [vmem:[#allocation6 + $0x1c] sm:$0xf]
    %v138 = vld [vmem:[#allocation6 + $0x20] sm:$0xf]
    %v139 = vld [vmem:[#allocation6 + $0x24] sm:$0xf]
    %v140 = vld [vmem:[#allocation6 + $0x28] sm:$0xf]
    %v141 = vld [vmem:[#allocation6 + $0x2c] sm:$0xf]
    %v142 = vld [vmem:[#allocation6 + $0x30] sm:$0xf]
    %v143 = vld [vmem:[#allocation6 + $0x34] sm:$0xf]
    %v144 = vld [vmem:[#allocation6 + $0x38] sm:$0xf]
    %v145 = vld [vmem:[#allocation6 + $0x3c] sm:$0xf]
    %146 = vst [vmem:[#allocation2] sm:$0xf] %v130
    %147 = vst [vmem:[#allocation2 + $0x8] sm:$0xf] %v131
    %148 = vst [vmem:[#allocation2 + $0x10] sm:$0xf] %v132
    %149 = vst [vmem:[#allocation2 + $0x18] sm:$0xf] %v133
    %150 = vst [vmem:[#allocation2 + $0x20] sm:$0xf] %v134
    %151 = vst [vmem:[#allocation2 + $0x28] sm:$0xf] %v135
    %152 = vst [vmem:[#allocation2 + $0x30] sm:$0xf] %v136
    %153 = vst [vmem:[#allocation2 + $0x38] sm:$0xf] %v137
    %154 = vst [vmem:[#allocation2 + $0x40] sm:$0xf] %v138
    %155 = vst [vmem:[#allocation2 + $0x48] sm:$0xf] %v139
    %156 = vst [vmem:[#allocation2 + $0x50] sm:$0xf] %v140
    %157 = vst [vmem:[#allocation2 + $0x58] sm:$0xf] %v141
    %158 = vst [vmem:[#allocation2 + $0x60] sm:$0xf] %v142
    %159 = vst [vmem:[#allocation2 + $0x68] sm:$0xf] %v143
    %160 = vst [vmem:[#allocation2 + $0x70] sm:$0xf] %v144
    %161 = vst [vmem:[#allocation2 + $0x78] sm:$0xf] %v145
    %v162 = vld [vmem:[#allocation2] sm:$0xf]
    %v163 = vld [vmem:[#allocation2 + $0x8] sm:$0xf]
    %v164 = vld [vmem:[#allocation2 + $0x10] sm:$0xf]
    %v165 = vld [vmem:[#allocation2 + $0x18] sm:$0xf]
    %v166 = vld [vmem:[#allocation2 + $0x20] sm:$0xf]
    %v167 = vld [vmem:[#allocation2 + $0x28] sm:$0xf]
    %v168 = vld [vmem:[#allocation2 + $0x30] sm:$0xf]
    %v169 = vld [vmem:[#allocation2 + $0x38] sm:$0xf]
    %v170 = vld [vmem:[#allocation2 + $0x40] sm:$0xf]
    %v171 = vld [vmem:[#allocation2 + $0x48] sm:$0xf]
    %v172 = vld [vmem:[#allocation2 + $0x50] sm:$0xf]
    %v173 = vld [vmem:[#allocation2 + $0x58] sm:$0xf]
    %v174 = vld [vmem:[#allocation2 + $0x60] sm:$0xf]
    %v175 = vld [vmem:[#allocation2 + $0x68] sm:$0xf]
    %v176 = vld [vmem:[#allocation2 + $0x70] sm:$0xf]
    %v177 = vld [vmem:[#allocation2 + $0x78] sm:$0xf]
    %v194 = vunpack.c.l.b16 %v98
    %v195 = vunpack.c.l.b16 %v99
    %v196 = vunpack.c.l.b16 %v100
    %v197 = vunpack.c.l.b16 %v101
    %v198 = vunpack.c.l.b16 %v102
    %v199 = vunpack.c.l.b16 %v103
    %v200 = vunpack.c.l.b16 %v104
    %v201 = vunpack.c.l.b16 %v105
    %v202 = vunpack.c.l.b16 %v106
    %v203 = vunpack.c.l.b16 %v107
    %v204 = vunpack.c.l.b16 %v108
    %v205 = vunpack.c.l.b16 %v109
    %v206 = vunpack.c.l.b16 %v110
    %v207 = vunpack.c.l.b16 %v111
    %v208 = vunpack.c.l.b16 %v112
    %v209 = vunpack.c.l.b16 %v113
    %v210 = vpack.c.b16 %v195, %v194
    %v211 = vpack.c.b16 %v197, %v196
    %v212 = vpack.c.b16 %v199, %v198
    %v213 = vpack.c.b16 %v201, %v200
    %v214 = vpack.c.b16 %v203, %v202
    %v215 = vpack.c.b16 %v205, %v204
    %v216 = vpack.c.b16 %v207, %v206
    %v217 = vpack.c.b16 %v209, %v208
    %v242 = vunpack.c.l.b16 %v162
    %v243 = vunpack.c.l.b16 %v163
    %v244 = vunpack.c.l.b16 %v164
    %v245 = vunpack.c.l.b16 %v165
    %v246 = vunpack.c.l.b16 %v166
    %v247 = vunpack.c.l.b16 %v167
    %v248 = vunpack.c.l.b16 %v168
    %v249 = vunpack.c.l.b16 %v169
    %v250 = vunpack.c.l.b16 %v170
    %v251 = vunpack.c.l.b16 %v171
    %v252 = vunpack.c.l.b16 %v172
    %v253 = vunpack.c.l.b16 %v173
    %v254 = vunpack.c.l.b16 %v174
    %v255 = vunpack.c.l.b16 %v175
    %v256 = vunpack.c.l.b16 %v176
    %v257 = vunpack.c.l.b16 %v177
    %v258 = vpack.c.b16 %v243, %v242
    %v259 = vpack.c.b16 %v245, %v244
    %v260 = vpack.c.b16 %v247, %v246
    %v261 = vpack.c.b16 %v249, %v248
    %v262 = vpack.c.b16 %v251, %v250
    %v263 = vpack.c.b16 %v253, %v252
    %v264 = vpack.c.b16 %v255, %v254
    %v265 = vpack.c.b16 %v257, %v256
    %274 = vmatprep.subr.bf16.mxu0 0
    %275 = vmatpush1.bf16.msra.mxu0 %v265
    %276 = vmatprep.subr.bf16.mxu0 0
    %277 = vmatpush1.bf16.msra.mxu0 %v264
    %278 = vmatprep.subr.bf16.mxu0 0
    %279 = vmatpush1.bf16.msra.mxu0 %v263
    %280 = vmatprep.subr.bf16.mxu0 0
    %281 = vmatpush1.bf16.msra.mxu0 %v262
    %282 = vmatprep.subr.bf16.mxu0 0
    %283 = vmatpush1.bf16.msra.mxu0 %v261
    %284 = vmatprep.subr.bf16.mxu0 0
    %285 = vmatpush1.bf16.msra.mxu0 %v260
    %286 = vmatprep.subr.bf16.mxu0 0
    %287 = vmatpush1.bf16.msra.mxu0 %v259
    %288 = vmatprep.subr.bf16.mxu0 0
    %289 = vmatpush1.bf16.msra.mxu0 %v258
    %290 = vmatprep.subr.bf16.mxu0 0
    %291 = vmatpush2.bf16.msra.mxu0 0
    %292 = vmatprep.subr.bf16.mxu0 0
    %293 = vmatpush2.bf16.msra.mxu0 0
    %294 = vmatprep.subr.bf16.mxu0 0
    %295 = vmatpush2.bf16.msra.mxu0 0
    %296 = vmatprep.subr.bf16.mxu0 0
    %297 = vmatpush2.bf16.msra.mxu0 0
    %298 = vmatprep.subr.bf16.mxu0 0
    %299 = vmatpush2.bf16.msra.mxu0 0
    %300 = vmatprep.subr.bf16.mxu0 0
    %301 = vmatpush2.bf16.msra.mxu0 0
    %302 = vmatprep.subr.bf16.mxu0 0
    %303 = vmatpush2.bf16.msra.mxu0 0
    %304 = vmatprep.subr.bf16.mxu0 0
    %305 = vmatpush2.bf16.msra.mxu0 0
    %306 = vmatprep.mubr.bf16.mxu0 0
    %307 = vmatmul.mubr.bf16.gmra.mxu0 %v210
    %v308 = vpop.f32.mrf.mxu0
    %v309 = vadd.f32 0.0, %v308
    %v310 = vpop.f32.mrf.mxu0
    %v311 = vpop.f32.mrf.mxu0
    %v312 = vadd.f32 0.0, %v311
    %v313 = vpop.f32.mrf.mxu0
    %314 = vmatprep.mubr.bf16.mxu0 0
    %315 = vmatmul.mubr.bf16.gmra.mxu0 %v211
    %v316 = vpop.f32.mrf.mxu0
    %v317 = vadd.f32 0.0, %v316
    %v318 = vpop.f32.mrf.mxu0
    %v319 = vpop.f32.mrf.mxu0
    %v320 = vadd.f32 0.0, %v319
    %v321 = vpop.f32.mrf.mxu0
    %322 = vmatprep.mubr.bf16.mxu0 0
    %323 = vmatmul.mubr.bf16.gmra.mxu0 %v212
    %v324 = vpop.f32.mrf.mxu0
    %v325 = vadd.f32 0.0, %v324
    %v326 = vpop.f32.mrf.mxu0
    %v327 = vpop.f32.mrf.mxu0
    %v328 = vadd.f32 0.0, %v327
    %v329 = vpop.f32.mrf.mxu0
    %330 = vmatprep.mubr.bf16.mxu0 0
    %331 = vmatmul.mubr.bf16.gmra.mxu0 %v213
    %v332 = vpop.f32.mrf.mxu0
    %v333 = vadd.f32 0.0, %v332
    %v334 = vpop.f32.mrf.mxu0
    %v335 = vpop.f32.mrf.mxu0
    %v336 = vadd.f32 0.0, %v335
    %v337 = vpop.f32.mrf.mxu0
    %338 = vmatprep.mubr.bf16.mxu0 0
    %339 = vmatmul.mubr.bf16.gmra.mxu0 %v214
    %v340 = vpop.f32.mrf.mxu0
    %v341 = vadd.f32 0.0, %v340
    %v342 = vpop.f32.mrf.mxu0
    %v343 = vpop.f32.mrf.mxu0
    %v344 = vadd.f32 0.0, %v343
    %v345 = vpop.f32.mrf.mxu0
    %346 = vmatprep.mubr.bf16.mxu0 0
    %347 = vmatmul.mubr.bf16.gmra.mxu0 %v215
    %v348 = vpop.f32.mrf.mxu0
    %v349 = vadd.f32 0.0, %v348
    %v350 = vpop.f32.mrf.mxu0
    %v351 = vpop.f32.mrf.mxu0
    %v352 = vadd.f32 0.0, %v351
    %v353 = vpop.f32.mrf.mxu0
    %354 = vmatprep.mubr.bf16.mxu0 0
    %355 = vmatmul.mubr.bf16.gmra.mxu0 %v216
    %v356 = vpop.f32.mrf.mxu0
    %v357 = vadd.f32 0.0, %v356
    %v358 = vpop.f32.mrf.mxu0
    %v359 = vpop.f32.mrf.mxu0
    %v360 = vadd.f32 0.0, %v359
    %v361 = vpop.f32.mrf.mxu0
    %362 = vmatprep.mubr.bf16.mxu0 0
    %363 = vmatmul.mubr.bf16.gmra.mxu0 %v217
    %v364 = vpop.f32.mrf.mxu0
    %v365 = vadd.f32 0.0, %v364
    %v366 = vpop.f32.mrf.mxu0
    %v367 = vpop.f32.mrf.mxu0
    %v368 = vadd.f32 0.0, %v367
    %v369 = vpop.f32.mrf.mxu0
    %370 = vdwg.mxu0
    %v371 = vpack.c.bf16 %v312, %v309
    %v372 = vpack.c.bf16 %v320, %v317
    %v373 = vpack.c.bf16 %v328, %v325
    %v374 = vpack.c.bf16 %v336, %v333
    %v375 = vpack.c.bf16 %v344, %v341
    %v376 = vpack.c.bf16 %v352, %v349
    %v377 = vpack.c.bf16 %v360, %v357
    %v378 = vpack.c.bf16 %v368, %v365
    %v387 = vunpack.c.l.b16 %v371
    %v388 = vunpack.c.h.b16 %v371
    %v389 = vunpack.c.l.b16 %v372
    %v390 = vunpack.c.h.b16 %v372
    %v391 = vunpack.c.l.b16 %v373
    %v392 = vunpack.c.h.b16 %v373
    %v393 = vunpack.c.l.b16 %v374
    %v394 = vunpack.c.h.b16 %v374
    %v395 = vunpack.c.l.b16 %v375
    %v396 = vunpack.c.h.b16 %v375
    %v397 = vunpack.c.l.b16 %v376
    %v398 = vunpack.c.h.b16 %v376
    %v399 = vunpack.c.l.b16 %v377
    %v400 = vunpack.c.h.b16 %v377
    %v401 = vunpack.c.l.b16 %v378
    %v402 = vunpack.c.h.b16 %v378
    %v403 = vpack.c.b16 %v387, %v387
    %v404 = vpack.c.b16 %v388, %v388
    %v405 = vpack.c.b16 %v389, %v389
    %v406 = vpack.c.b16 %v390, %v390
    %v407 = vpack.c.b16 %v391, %v391
    %v408 = vpack.c.b16 %v392, %v392
    %v409 = vpack.c.b16 %v393, %v393
    %v410 = vpack.c.b16 %v394, %v394
    %v411 = vpack.c.b16 %v395, %v395
    %v412 = vpack.c.b16 %v396, %v396
    %v413 = vpack.c.b16 %v397, %v397
    %v414 = vpack.c.b16 %v398, %v398
    %v415 = vpack.c.b16 %v399, %v399
    %v416 = vpack.c.b16 %v400, %v400
    %v417 = vpack.c.b16 %v401, %v401
    %v418 = vpack.c.b16 %v402, %v402
    %435 = vst [vmem:[#allocation2 + $0x4] sm:$0xf] %v403
    %436 = vst [vmem:[#allocation2 + $0xc] sm:$0xf] %v404
    %437 = vst [vmem:[#allocation2 + $0x14] sm:$0xf] %v405
    %438 = vst [vmem:[#allocation2 + $0x1c] sm:$0xf] %v406
    %439 = vst [vmem:[#allocation2 + $0x24] sm:$0xf] %v407
    %440 = vst [vmem:[#allocation2 + $0x2c] sm:$0xf] %v408
    %441 = vst [vmem:[#allocation2 + $0x34] sm:$0xf] %v409
    %442 = vst [vmem:[#allocation2 + $0x3c] sm:$0xf] %v410
    %443 = vst [vmem:[#allocation2 + $0x44] sm:$0xf] %v411
    %444 = vst [vmem:[#allocation2 + $0x4c] sm:$0xf] %v412
    %445 = vst [vmem:[#allocation2 + $0x54] sm:$0xf] %v413
    %446 = vst [vmem:[#allocation2 + $0x5c] sm:$0xf] %v414
    %447 = vst [vmem:[#allocation2 + $0x64] sm:$0xf] %v415
    %448 = vst [vmem:[#allocation2 + $0x6c] sm:$0xf] %v416
    %449 = vst [vmem:[#allocation2 + $0x74] sm:$0xf] %v417
    %450 = vst [vmem:[#allocation2 + $0x7c] sm:$0xf] %v418
    %v451 = vld [vmem:[#allocation2] sm:$0xff]
    %v452 = vld [vmem:[#allocation2 + $0x8] sm:$0xff]
    %v453 = vld [vmem:[#allocation2 + $0x10] sm:$0xff]
    %v454 = vld [vmem:[#allocation2 + $0x18] sm:$0xff]
    %v455 = vld [vmem:[#allocation2 + $0x20] sm:$0xff]
    %v456 = vld [vmem:[#allocation2 + $0x28] sm:$0xff]
    %v457 = vld [vmem:[#allocation2 + $0x30] sm:$0xff]
    %v458 = vld [vmem:[#allocation2 + $0x38] sm:$0xff]
    %v459 = vld [vmem:[#allocation2 + $0x40] sm:$0xff]
    %v460 = vld [vmem:[#allocation2 + $0x48] sm:$0xff]
    %v461 = vld [vmem:[#allocation2 + $0x50] sm:$0xff]
    %v462 = vld [vmem:[#allocation2 + $0x58] sm:$0xff]
    %v463 = vld [vmem:[#allocation2 + $0x60] sm:$0xff]
    %v464 = vld [vmem:[#allocation2 + $0x68] sm:$0xff]
    %v465 = vld [vmem:[#allocation2 + $0x70] sm:$0xff]
    %v466 = vld [vmem:[#allocation2 + $0x78] sm:$0xff]
    %v467 = vld [vmem:[%s3] sm:$0xf]
    %v468 = vld [vmem:[%s3 + $0x4] sm:$0xf]
    %v469 = vld [vmem:[%s3 + $0x8] sm:$0xf]
    %v470 = vld [vmem:[%s3 + $0xc] sm:$0xf]
    %v471 = vld [vmem:[%s3 + $0x10] sm:$0xf]
    %v472 = vld [vmem:[%s3 + $0x14] sm:$0xf]
    %v473 = vld [vmem:[%s3 + $0x18] sm:$0xf]
    %v474 = vld [vmem:[%s3 + $0x1c] sm:$0xf]
    %v475 = vld [vmem:[%s3 + $0x20] sm:$0xf]
    %v476 = vld [vmem:[%s3 + $0x24] sm:$0xf]
    %v477 = vld [vmem:[%s3 + $0x28] sm:$0xf]
    %v478 = vld [vmem:[%s3 + $0x2c] sm:$0xf]
    %v479 = vld [vmem:[%s3 + $0x30] sm:$0xf]
    %v480 = vld [vmem:[%s3 + $0x34] sm:$0xf]
    %v481 = vld [vmem:[%s3 + $0x38] sm:$0xf]
    %v482 = vld [vmem:[%s3 + $0x3c] sm:$0xf]
    %v483 = vld [vmem:[%s3 + $0x40] sm:$0xf]
    %v484 = vld [vmem:[%s3 + $0x44] sm:$0xf]
    %v485 = vld [vmem:[%s3 + $0x48] sm:$0xf]
    %v486 = vld [vmem:[%s3 + $0x4c] sm:$0xf]
    %v487 = vld [vmem:[%s3 + $0x50] sm:$0xf]
    %v488 = vld [vmem:[%s3 + $0x54] sm:$0xf]
    %v489 = vld [vmem:[%s3 + $0x58] sm:$0xf]
    %v490 = vld [vmem:[%s3 + $0x5c] sm:$0xf]
    %v491 = vld [vmem:[%s3 + $0x60] sm:$0xf]
    %v492 = vld [vmem:[%s3 + $0x64] sm:$0xf]
    %v493 = vld [vmem:[%s3 + $0x68] sm:$0xf]
    %v494 = vld [vmem:[%s3 + $0x6c] sm:$0xf]
    %v495 = vld [vmem:[%s3 + $0x70] sm:$0xf]
    %v496 = vld [vmem:[%s3 + $0x74] sm:$0xf]
    %v497 = vld [vmem:[%s3 + $0x78] sm:$0xf]
    %v498 = vld [vmem:[%s3 + $0x7c] sm:$0xf]
    %v515 = vunpack.c.l.b16 %v451
    %v516 = vunpack.c.h.b16 %v451
    %v517 = vunpack.c.l.b16 %v452
    %v518 = vunpack.c.h.b16 %v452
    %v519 = vunpack.c.l.b16 %v453
    %v520 = vunpack.c.h.b16 %v453
    %v521 = vunpack.c.l.b16 %v454
    %v522 = vunpack.c.h.b16 %v454
    %v523 = vunpack.c.l.b16 %v455
    %v524 = vunpack.c.h.b16 %v455
    %v525 = vunpack.c.l.b16 %v456
    %v526 = vunpack.c.h.b16 %v456
    %v527 = vunpack.c.l.b16 %v457
    %v528 = vunpack.c.h.b16 %v457
    %v529 = vunpack.c.l.b16 %v458
    %v530 = vunpack.c.h.b16 %v458
    %v531 = vunpack.c.l.b16 %v459
    %v532 = vunpack.c.h.b16 %v459
    %v533 = vunpack.c.l.b16 %v460
    %v534 = vunpack.c.h.b16 %v460
    %v535 = vunpack.c.l.b16 %v461
    %v536 = vunpack.c.h.b16 %v461
    %v537 = vunpack.c.l.b16 %v462
    %v538 = vunpack.c.h.b16 %v462
    %v539 = vunpack.c.l.b16 %v463
    %v540 = vunpack.c.h.b16 %v463
    %v541 = vunpack.c.l.b16 %v464
    %v542 = vunpack.c.h.b16 %v464
    %v543 = vunpack.c.l.b16 %v465
    %v544 = vunpack.c.h.b16 %v465
    %v545 = vunpack.c.l.b16 %v466
    %v546 = vunpack.c.h.b16 %v466
    %v547 = vpack.c.b16 %v517, %v515
    %v548 = vpack.c.b16 %v518, %v516
    %v549 = vpack.c.b16 %v521, %v519
    %v550 = vpack.c.b16 %v522, %v520
    %v551 = vpack.c.b16 %v525, %v523
    %v552 = vpack.c.b16 %v526, %v524
    %v553 = vpack.c.b16 %v529, %v527
    %v554 = vpack.c.b16 %v530, %v528
    %v555 = vpack.c.b16 %v533, %v531
    %v556 = vpack.c.b16 %v534, %v532
    %v557 = vpack.c.b16 %v537, %v535
    %v558 = vpack.c.b16 %v538, %v536
    %v559 = vpack.c.b16 %v541, %v539
    %v560 = vpack.c.b16 %v542, %v540
    %v561 = vpack.c.b16 %v545, %v543
    %v562 = vpack.c.b16 %v546, %v544
    %v611 = vunpack.c.l.b16 %v467
    %v612 = vunpack.c.l.b16 %v468
    %v613 = vunpack.c.l.b16 %v469
    %v614 = vunpack.c.l.b16 %v470
    %v615 = vunpack.c.l.b16 %v471
    %v616 = vunpack.c.l.b16 %v472
    %v617 = vunpack.c.l.b16 %v473
    %v618 = vunpack.c.l.b16 %v474
    %v619 = vunpack.c.l.b16 %v475
    %v620 = vunpack.c.l.b16 %v476
    %v621 = vunpack.c.l.b16 %v477
    %v622 = vunpack.c.l.b16 %v478
    %v623 = vunpack.c.l.b16 %v479
    %v624 = vunpack.c.l.b16 %v480
    %v625 = vunpack.c.l.b16 %v481
    %v626 = vunpack.c.l.b16 %v482
    %v627 = vunpack.c.l.b16 %v483
    %v628 = vunpack.c.l.b16 %v484
    %v629 = vunpack.c.l.b16 %v485
    %v630 = vunpack.c.l.b16 %v486
    %v631 = vunpack.c.l.b16 %v487
    %v632 = vunpack.c.l.b16 %v488
    %v633 = vunpack.c.l.b16 %v489
    %v634 = vunpack.c.l.b16 %v490
    %v635 = vunpack.c.l.b16 %v491
    %v636 = vunpack.c.l.b16 %v492
    %v637 = vunpack.c.l.b16 %v493
    %v638 = vunpack.c.l.b16 %v494
    %v639 = vunpack.c.l.b16 %v495
    %v640 = vunpack.c.l.b16 %v496
    %v641 = vunpack.c.l.b16 %v497
    %v642 = vunpack.c.l.b16 %v498
    %v643 = vpack.c.b16 %v612, %v611
    %v644 = vpack.c.b16 %v614, %v613
    %v645 = vpack.c.b16 %v616, %v615
    %v646 = vpack.c.b16 %v618, %v617
    %v647 = vpack.c.b16 %v620, %v619
    %v648 = vpack.c.b16 %v622, %v621
    %v649 = vpack.c.b16 %v624, %v623
    %v650 = vpack.c.b16 %v626, %v625
    %v651 = vpack.c.b16 %v628, %v627
    %v652 = vpack.c.b16 %v630, %v629
    %v653 = vpack.c.b16 %v632, %v631
    %v654 = vpack.c.b16 %v634, %v633
    %v655 = vpack.c.b16 %v636, %v635
    %v656 = vpack.c.b16 %v638, %v637
    %v657 = vpack.c.b16 %v640, %v639
    %v658 = vpack.c.b16 %v642, %v641
    %675 = vmatprep.subr.bf16.mxu0 0
    %676 = vmatpush1.bf16.msra.mxu0 %v650
    %677 = vmatprep.subr.bf16.mxu0 0
    %678 = vmatpush1.bf16.msra.mxu0 %v649
    %679 = vmatprep.subr.bf16.mxu0 0
    %680 = vmatpush1.bf16.msra.mxu0 %v648
    %681 = vmatprep.subr.bf16.mxu0 0
    %682 = vmatpush1.bf16.msra.mxu0 %v647
    %683 = vmatprep.subr.bf16.mxu0 0
    %684 = vmatpush1.bf16.msra.mxu0 %v646
    %685 = vmatprep.subr.bf16.mxu0 0
    %686 = vmatpush1.bf16.msra.mxu0 %v645
    %687 = vmatprep.subr.bf16.mxu0 0
    %688 = vmatpush1.bf16.msra.mxu0 %v644
    %689 = vmatprep.subr.bf16.mxu0 0
    %690 = vmatpush1.bf16.msra.mxu0 %v643
    %691 = vmatprep.subr.bf16.mxu0 0
    %692 = vmatpush2.bf16.msra.mxu0 %v658
    %693 = vmatprep.subr.bf16.mxu0 0
    %694 = vmatpush2.bf16.msra.mxu0 %v657
    %695 = vmatprep.subr.bf16.mxu0 0
    %696 = vmatpush2.bf16.msra.mxu0 %v656
    %697 = vmatprep.subr.bf16.mxu0 0
    %698 = vmatpush2.bf16.msra.mxu0 %v655
    %699 = vmatprep.subr.bf16.mxu0 0
    %700 = vmatpush2.bf16.msra.mxu0 %v654
    %701 = vmatprep.subr.bf16.mxu0 0
    %702 = vmatpush2.bf16.msra.mxu0 %v653
    %703 = vmatprep.subr.bf16.mxu0 0
    %704 = vmatpush2.bf16.msra.mxu0 %v652
    %705 = vmatprep.subr.bf16.mxu0 0
    %706 = vmatpush2.bf16.msra.mxu0 %v651
    %707 = vmatprep.mubr.bf16.mxu0 %v548
    %708 = vmatmul.mubr.bf16.gmra.mxu0 %v547
    %v709 = vpop.f32.mrf.mxu0
    %v710 = vadd.f32 0.0, %v709
    %v711 = vpop.f32.mrf.mxu0
    %v712 = vpop.f32.mrf.mxu0
    %v713 = vadd.f32 0.0, %v712
    %v714 = vpop.f32.mrf.mxu0
    %715 = vmatprep.mubr.bf16.mxu0 %v550
    %716 = vmatmul.mubr.bf16.gmra.mxu0 %v549
    %v717 = vpop.f32.mrf.mxu0
    %v718 = vadd.f32 0.0, %v717
    %v719 = vpop.f32.mrf.mxu0
    %v720 = vpop.f32.mrf.mxu0
    %v721 = vadd.f32 0.0, %v720
    %v722 = vpop.f32.mrf.mxu0
    %723 = vmatprep.mubr.bf16.mxu0 %v552
    %724 = vmatmul.mubr.bf16.gmra.mxu0 %v551
    %v725 = vpop.f32.mrf.mxu0
    %v726 = vadd.f32 0.0, %v725
    %v727 = vpop.f32.mrf.mxu0
    %v728 = vpop.f32.mrf.mxu0
    %v729 = vadd.f32 0.0, %v728
    %v730 = vpop.f32.mrf.mxu0
    %731 = vmatprep.mubr.bf16.mxu0 %v554
    %732 = vmatmul.mubr.bf16.gmra.mxu0 %v553
    %v733 = vpop.f32.mrf.mxu0
    %v734 = vadd.f32 0.0, %v733
    %v735 = vpop.f32.mrf.mxu0
    %v736 = vpop.f32.mrf.mxu0
    %v737 = vadd.f32 0.0, %v736
    %v738 = vpop.f32.mrf.mxu0
    %739 = vmatprep.mubr.bf16.mxu0 %v556
    %740 = vmatmul.mubr.bf16.gmra.mxu0 %v555
    %v741 = vpop.f32.mrf.mxu0
    %v742 = vadd.f32 0.0, %v741
    %v743 = vpop.f32.mrf.mxu0
    %v744 = vpop.f32.mrf.mxu0
    %v745 = vadd.f32 0.0, %v744
    %v746 = vpop.f32.mrf.mxu0
    %747 = vmatprep.mubr.bf16.mxu0 %v558
    %748 = vmatmul.mubr.bf16.gmra.mxu0 %v557
    %v749 = vpop.f32.mrf.mxu0
    %v750 = vadd.f32 0.0, %v749
    %v751 = vpop.f32.mrf.mxu0
    %v752 = vpop.f32.mrf.mxu0
    %v753 = vadd.f32 0.0, %v752
    %v754 = vpop.f32.mrf.mxu0
    %755 = vmatprep.mubr.bf16.mxu0 %v560
    %756 = vmatmul.mubr.bf16.gmra.mxu0 %v559
    %v757 = vpop.f32.mrf.mxu0
    %v758 = vadd.f32 0.0, %v757
    %v759 = vpop.f32.mrf.mxu0
    %v760 = vpop.f32.mrf.mxu0
    %v761 = vadd.f32 0.0, %v760
    %v762 = vpop.f32.mrf.mxu0
    %763 = vmatprep.mubr.bf16.mxu0 %v562
    %764 = vmatmul.mubr.bf16.gmra.mxu0 %v561
    %v765 = vpop.f32.mrf.mxu0
    %v766 = vadd.f32 0.0, %v765
    %v767 = vpop.f32.mrf.mxu0
    %v768 = vpop.f32.mrf.mxu0
    %v769 = vadd.f32 0.0, %v768
    %v770 = vpop.f32.mrf.mxu0
    %771 = vdwg.mxu0
    %v772 = vld [vmem:[%s4] sm:$0x1]
    %v774 = vlaneseq
    %v775 = vshrl.u32 %v774, 7
    %v776 = vsub.s32 0, %v775
    %v777 = vrot.slane %v772, %v776
    %v779 = vmul.f32 %v710, %v777
    %v780 = vmul.f32 %v713, %v777
    %v781 = vmul.f32 %v718, %v777
    %v782 = vmul.f32 %v721, %v777
    %v783 = vmul.f32 %v726, %v777
    %v784 = vmul.f32 %v729, %v777
    %v785 = vmul.f32 %v734, %v777
    %v786 = vmul.f32 %v737, %v777
    %v787 = vmul.f32 %v742, %v777
    %v788 = vmul.f32 %v745, %v777
    %v789 = vmul.f32 %v750, %v777
    %v790 = vmul.f32 %v753, %v777
    %v791 = vmul.f32 %v758, %v777
    %v792 = vmul.f32 %v761, %v777
    %v793 = vmul.f32 %v766, %v777
    %v794 = vmul.f32 %v769, %v777
    %v795 = vld [vmem:[%s5] sm:$0x1]
    %v797 = vlaneseq
    %v798 = vshrl.u32 %v797, 7
    %v799 = vsub.s32 0, %v798
    %v800 = vrot.slane %v795, %v799
    %v802 = vadd.f32 %v779, %v800
    %v803 = vadd.f32 %v780, %v800
    %v804 = vadd.f32 %v781, %v800
    %v805 = vadd.f32 %v782, %v800
    %v806 = vadd.f32 %v783, %v800
    %v807 = vadd.f32 %v784, %v800
    %v808 = vadd.f32 %v785, %v800
    %v809 = vadd.f32 %v786, %v800
    %v810 = vadd.f32 %v787, %v800
    %v811 = vadd.f32 %v788, %v800
    %v812 = vadd.f32 %v789, %v800
    %v813 = vadd.f32 %v790, %v800
    %v814 = vadd.f32 %v791, %v800
    %v815 = vadd.f32 %v792, %v800
    %v816 = vadd.f32 %v793, %v800
    %v817 = vadd.f32 %v794, %v800
    %819 = vset.pattern.permute.xlu0 0
    %820 = vperm.xlu0 %819, %v114
    %v821 = vpop.permute.xlu0 %820
    %824 = vset.pattern.permute.xlu0 0
    %825 = vperm.xlu0 %824, %v115
    %v826 = vpop.permute.xlu0 %825
    %829 = vset.pattern.permute.xlu0 0
    %830 = vperm.xlu0 %829, %v116
    %v831 = vpop.permute.xlu0 %830
    %834 = vset.pattern.permute.xlu0 0
    %835 = vperm.xlu0 %834, %v117
    %v836 = vpop.permute.xlu0 %835
    %839 = vset.pattern.permute.xlu0 0
    %840 = vperm.xlu0 %839, %v118
    %v841 = vpop.permute.xlu0 %840
    %844 = vset.pattern.permute.xlu0 0
    %845 = vperm.xlu0 %844, %v119
    %v846 = vpop.permute.xlu0 %845
    %849 = vset.pattern.permute.xlu0 0
    %850 = vperm.xlu0 %849, %v120
    %v851 = vpop.permute.xlu0 %850
    %854 = vset.pattern.permute.xlu0 0
    %855 = vperm.xlu0 %854, %v121
    %v856 = vpop.permute.xlu0 %855
    %859 = vset.pattern.permute.xlu0 0
    %860 = vperm.xlu0 %859, %v122
    %v861 = vpop.permute.xlu0 %860
    %864 = vset.pattern.permute.xlu0 0
    %865 = vperm.xlu0 %864, %v123
    %v866 = vpop.permute.xlu0 %865
    %869 = vset.pattern.permute.xlu0 0
    %870 = vperm.xlu0 %869, %v124
    %v871 = vpop.permute.xlu0 %870
    %874 = vset.pattern.permute.xlu0 0
    %875 = vperm.xlu0 %874, %v125
    %v876 = vpop.permute.xlu0 %875
    %879 = vset.pattern.permute.xlu0 0
    %880 = vperm.xlu0 %879, %v126
    %v881 = vpop.permute.xlu0 %880
    %884 = vset.pattern.permute.xlu0 0
    %885 = vperm.xlu0 %884, %v127
    %v886 = vpop.permute.xlu0 %885
    %889 = vset.pattern.permute.xlu0 0
    %890 = vperm.xlu0 %889, %v128
    %v891 = vpop.permute.xlu0 %890
    %894 = vset.pattern.permute.xlu0 0
    %895 = vperm.xlu0 %894, %v129
    %v896 = vpop.permute.xlu0 %895
    %v898 = vmul.f32 %v802, %v821
    %v899 = vmul.f32 %v803, %v826
    %v900 = vmul.f32 %v804, %v831
    %v901 = vmul.f32 %v805, %v836
    %v902 = vmul.f32 %v806, %v841
    %v903 = vmul.f32 %v807, %v846
    %v904 = vmul.f32 %v808, %v851
    %v905 = vmul.f32 %v809, %v856
    %v906 = vmul.f32 %v810, %v861
    %v907 = vmul.f32 %v811, %v866
    %v908 = vmul.f32 %v812, %v871
    %v909 = vmul.f32 %v813, %v876
    %v910 = vmul.f32 %v814, %v881
    %v911 = vmul.f32 %v815, %v886
    %v912 = vmul.f32 %v816, %v891
    %v913 = vmul.f32 %v817, %v896
    %v914 = vmax.f32 %v898, 0.0
    %v915 = vmax.f32 %v899, 0.0
    %v916 = vmax.f32 %v900, 0.0
    %v917 = vmax.f32 %v901, 0.0
    %v918 = vmax.f32 %v902, 0.0
    %v919 = vmax.f32 %v903, 0.0
    %v920 = vmax.f32 %v904, 0.0
    %v921 = vmax.f32 %v905, 0.0
    %v922 = vmax.f32 %v906, 0.0
    %v923 = vmax.f32 %v907, 0.0
    %v924 = vmax.f32 %v908, 0.0
    %v925 = vmax.f32 %v909, 0.0
    %v926 = vmax.f32 %v910, 0.0
    %v927 = vmax.f32 %v911, 0.0
    %v928 = vmax.f32 %v912, 0.0
    %v929 = vmax.f32 %v913, 0.0
    %v930 = vpack.c.bf16 %v915, %v914
    %v931 = vpack.c.bf16 %v917, %v916
    %v932 = vpack.c.bf16 %v919, %v918
    %v933 = vpack.c.bf16 %v921, %v920
    %v934 = vpack.c.bf16 %v923, %v922
    %v935 = vpack.c.bf16 %v925, %v924
    %v936 = vpack.c.bf16 %v927, %v926
    %v937 = vpack.c.bf16 %v929, %v928
    %v946 = vunpack.c.l.b16 %v930
    %v947 = vunpack.c.h.b16 %v930
    %v948 = vunpack.c.l.b16 %v931
    %v949 = vunpack.c.h.b16 %v931
    %v950 = vunpack.c.l.b16 %v932
    %v951 = vunpack.c.h.b16 %v932
    %v952 = vunpack.c.l.b16 %v933
    %v953 = vunpack.c.h.b16 %v933
    %v954 = vunpack.c.l.b16 %v934
    %v955 = vunpack.c.h.b16 %v934
    %v956 = vunpack.c.l.b16 %v935
    %v957 = vunpack.c.h.b16 %v935
    %v958 = vunpack.c.l.b16 %v936
    %v959 = vunpack.c.h.b16 %v936
    %v960 = vunpack.c.l.b16 %v937
    %v961 = vunpack.c.h.b16 %v937
    %v962 = vpack.c.b16 %v946, %v946
    %v963 = vpack.c.b16 %v947, %v947
    %v964 = vpack.c.b16 %v948, %v948
    %v965 = vpack.c.b16 %v949, %v949
    %v966 = vpack.c.b16 %v950, %v950
    %v967 = vpack.c.b16 %v951, %v951
    %v968 = vpack.c.b16 %v952, %v952
    %v969 = vpack.c.b16 %v953, %v953
    %v970 = vpack.c.b16 %v954, %v954
    %v971 = vpack.c.b16 %v955, %v955
    %v972 = vpack.c.b16 %v956, %v956
    %v973 = vpack.c.b16 %v957, %v957
    %v974 = vpack.c.b16 %v958, %v958
    %v975 = vpack.c.b16 %v959, %v959
    %v976 = vpack.c.b16 %v960, %v960
    %v977 = vpack.c.b16 %v961, %v961
    %994 = vst [vmem:[#allocation2] sm:$0xf] %v962
    %995 = vst [vmem:[#allocation2 + $0x8] sm:$0xf] %v963
    %996 = vst [vmem:[#allocation2 + $0x10] sm:$0xf] %v964
    %997 = vst [vmem:[#allocation2 + $0x18] sm:$0xf] %v965
    %998 = vst [vmem:[#allocation2 + $0x20] sm:$0xf] %v966
    %999 = vst [vmem:[#allocation2 + $0x28] sm:$0xf] %v967
    %1000 = vst [vmem:[#allocation2 + $0x30] sm:$0xf] %v968
    %1001 = vst [vmem:[#allocation2 + $0x38] sm:$0xf] %v969
    %1002 = vst [vmem:[#allocation2 + $0x40] sm:$0xf] %v970
    %1003 = vst [vmem:[#allocation2 + $0x48] sm:$0xf] %v971
    %1004 = vst [vmem:[#allocation2 + $0x50] sm:$0xf] %v972
    %1005 = vst [vmem:[#allocation2 + $0x58] sm:$0xf] %v973
    %1006 = vst [vmem:[#allocation2 + $0x60] sm:$0xf] %v974
    %1007 = vst [vmem:[#allocation2 + $0x68] sm:$0xf] %v975
    %1008 = vst [vmem:[#allocation2 + $0x70] sm:$0xf] %v976
    %1009 = vst [vmem:[#allocation2 + $0x78] sm:$0xf] %v977
    %v1010 = vld [vmem:[#allocation2] sm:$0xf]
    %v1011 = vld [vmem:[#allocation2 + $0x8] sm:$0xf]
    %v1012 = vld [vmem:[#allocation2 + $0x10] sm:$0xf]
    %v1013 = vld [vmem:[#allocation2 + $0x18] sm:$0xf]
    %v1014 = vld [vmem:[#allocation2 + $0x20] sm:$0xf]
    %v1015 = vld [vmem:[#allocation2 + $0x28] sm:$0xf]
    %v1016 = vld [vmem:[#allocation2 + $0x30] sm:$0xf]
    %v1017 = vld [vmem:[#allocation2 + $0x38] sm:$0xf]
    %v1018 = vld [vmem:[#allocation2 + $0x40] sm:$0xf]
    %v1019 = vld [vmem:[#allocation2 + $0x48] sm:$0xf]
    %v1020 = vld [vmem:[#allocation2 + $0x50] sm:$0xf]
    %v1021 = vld [vmem:[#allocation2 + $0x58] sm:$0xf]
    %v1022 = vld [vmem:[#allocation2 + $0x60] sm:$0xf]
    %v1023 = vld [vmem:[#allocation2 + $0x68] sm:$0xf]
    %v1024 = vld [vmem:[#allocation2 + $0x70] sm:$0xf]
    %v1025 = vld [vmem:[#allocation2 + $0x78] sm:$0xf]
    %v1042 = vunpack.c.l.b16 %v1010
    %v1043 = vunpack.c.l.b16 %v1011
    %v1044 = vunpack.c.l.b16 %v1012
    %v1045 = vunpack.c.l.b16 %v1013
    %v1046 = vunpack.c.l.b16 %v1014
    %v1047 = vunpack.c.l.b16 %v1015
    %v1048 = vunpack.c.l.b16 %v1016
    %v1049 = vunpack.c.l.b16 %v1017
    %v1050 = vunpack.c.l.b16 %v1018
    %v1051 = vunpack.c.l.b16 %v1019
    %v1052 = vunpack.c.l.b16 %v1020
    %v1053 = vunpack.c.l.b16 %v1021
    %v1054 = vunpack.c.l.b16 %v1022
    %v1055 = vunpack.c.l.b16 %v1023
    %v1056 = vunpack.c.l.b16 %v1024
    %v1057 = vunpack.c.l.b16 %v1025
    %v1058 = vpack.c.b16 %v1043, %v1042
    %v1059 = vpack.c.b16 %v1045, %v1044
    %v1060 = vpack.c.b16 %v1047, %v1046
    %v1061 = vpack.c.b16 %v1049, %v1048
    %v1062 = vpack.c.b16 %v1051, %v1050
    %v1063 = vpack.c.b16 %v1053, %v1052
    %v1064 = vpack.c.b16 %v1055, %v1054
    %v1065 = vpack.c.b16 %v1057, %v1056
    %1074 = vmatprep.subr.bf16.mxu0 0
    %1075 = vmatpush1.bf16.msra.mxu0 %v1065
    %1076 = vmatprep.subr.bf16.mxu0 0
    %1077 = vmatpush1.bf16.msra.mxu0 %v1064
    %1078 = vmatprep.subr.bf16.mxu0 0
    %1079 = vmatpush1.bf16.msra.mxu0 %v1063
    %1080 = vmatprep.subr.bf16.mxu0 0
    %1081 = vmatpush1.bf16.msra.mxu0 %v1062
    %1082 = vmatprep.subr.bf16.mxu0 0
    %1083 = vmatpush1.bf16.msra.mxu0 %v1061
    %1084 = vmatprep.subr.bf16.mxu0 0
    %1085 = vmatpush1.bf16.msra.mxu0 %v1060
    %1086 = vmatprep.subr.bf16.mxu0 0
    %1087 = vmatpush1.bf16.msra.mxu0 %v1059
    %1088 = vmatprep.subr.bf16.mxu0 0
    %1089 = vmatpush1.bf16.msra.mxu0 %v1058
    %1090 = vmatprep.subr.bf16.mxu0 0
    %1091 = vmatpush2.bf16.msra.mxu0 0
    %1092 = vmatprep.subr.bf16.mxu0 0
    %1093 = vmatpush2.bf16.msra.mxu0 0
    %1094 = vmatprep.subr.bf16.mxu0 0
    %1095 = vmatpush2.bf16.msra.mxu0 0
    %1096 = vmatprep.subr.bf16.mxu0 0
    %1097 = vmatpush2.bf16.msra.mxu0 0
    %1098 = vmatprep.subr.bf16.mxu0 0
    %1099 = vmatpush2.bf16.msra.mxu0 0
    %1100 = vmatprep.subr.bf16.mxu0 0
    %1101 = vmatpush2.bf16.msra.mxu0 0
    %1102 = vmatprep.subr.bf16.mxu0 0
    %1103 = vmatpush2.bf16.msra.mxu0 0
    %1104 = vmatprep.subr.bf16.mxu0 0
    %1105 = vmatpush2.bf16.msra.mxu0 0
    %1106 = vmatprep.mubr.bf16.mxu0 0
    %1107 = vmatmul.mubr.bf16.gmra.mxu0 %v210
    %v1108 = vpop.f32.mrf.mxu0
    %v1109 = vadd.f32 0.0, %v1108
    %v1110 = vpop.f32.mrf.mxu0
    %v1111 = vpop.f32.mrf.mxu0
    %v1112 = vadd.f32 0.0, %v1111
    %v1113 = vpop.f32.mrf.mxu0
    %1114 = vmatprep.mubr.bf16.mxu0 0
    %1115 = vmatmul.mubr.bf16.gmra.mxu0 %v211
    %v1116 = vpop.f32.mrf.mxu0
    %v1117 = vadd.f32 0.0, %v1116
    %v1118 = vpop.f32.mrf.mxu0
    %v1119 = vpop.f32.mrf.mxu0
    %v1120 = vadd.f32 0.0, %v1119
    %v1121 = vpop.f32.mrf.mxu0
    %1122 = vmatprep.mubr.bf16.mxu0 0
    %1123 = vmatmul.mubr.bf16.gmra.mxu0 %v212
    %v1124 = vpop.f32.mrf.mxu0
    %v1125 = vadd.f32 0.0, %v1124
    %v1126 = vpop.f32.mrf.mxu0
    %v1127 = vpop.f32.mrf.mxu0
    %v1128 = vadd.f32 0.0, %v1127
    %v1129 = vpop.f32.mrf.mxu0
    %1130 = vmatprep.mubr.bf16.mxu0 0
    %1131 = vmatmul.mubr.bf16.gmra.mxu0 %v213
    %v1132 = vpop.f32.mrf.mxu0
    %v1133 = vadd.f32 0.0, %v1132
    %v1134 = vpop.f32.mrf.mxu0
    %v1135 = vpop.f32.mrf.mxu0
    %v1136 = vadd.f32 0.0, %v1135
    %v1137 = vpop.f32.mrf.mxu0
    %1138 = vmatprep.mubr.bf16.mxu0 0
    %1139 = vmatmul.mubr.bf16.gmra.mxu0 %v214
    %v1140 = vpop.f32.mrf.mxu0
    %v1141 = vadd.f32 0.0, %v1140
    %v1142 = vpop.f32.mrf.mxu0
    %v1143 = vpop.f32.mrf.mxu0
    %v1144 = vadd.f32 0.0, %v1143
    %v1145 = vpop.f32.mrf.mxu0
    %1146 = vmatprep.mubr.bf16.mxu0 0
    %1147 = vmatmul.mubr.bf16.gmra.mxu0 %v215
    %v1148 = vpop.f32.mrf.mxu0
    %v1149 = vadd.f32 0.0, %v1148
    %v1150 = vpop.f32.mrf.mxu0
    %v1151 = vpop.f32.mrf.mxu0
    %v1152 = vadd.f32 0.0, %v1151
    %v1153 = vpop.f32.mrf.mxu0
    %1154 = vmatprep.mubr.bf16.mxu0 0
    %1155 = vmatmul.mubr.bf16.gmra.mxu0 %v216
    %v1156 = vpop.f32.mrf.mxu0
    %v1157 = vadd.f32 0.0, %v1156
    %v1158 = vpop.f32.mrf.mxu0
    %v1159 = vpop.f32.mrf.mxu0
    %v1160 = vadd.f32 0.0, %v1159
    %v1161 = vpop.f32.mrf.mxu0
    %1162 = vmatprep.mubr.bf16.mxu0 0
    %1163 = vmatmul.mubr.bf16.gmra.mxu0 %v217
    %v1164 = vpop.f32.mrf.mxu0
    %v1165 = vadd.f32 0.0, %v1164
    %v1166 = vpop.f32.mrf.mxu0
    %v1167 = vpop.f32.mrf.mxu0
    %v1168 = vadd.f32 0.0, %v1167
    %v1169 = vpop.f32.mrf.mxu0
    %1170 = vdwg.mxu0
    %v1171 = vpack.c.bf16 %v1112, %v1109
    %v1172 = vpack.c.bf16 %v1120, %v1117
    %v1173 = vpack.c.bf16 %v1128, %v1125
    %v1174 = vpack.c.bf16 %v1136, %v1133
    %v1175 = vpack.c.bf16 %v1144, %v1141
    %v1176 = vpack.c.bf16 %v1152, %v1149
    %v1177 = vpack.c.bf16 %v1160, %v1157
    %v1178 = vpack.c.bf16 %v1168, %v1165
    %v1187 = vunpack.c.l.b16 %v1171
    %v1188 = vunpack.c.h.b16 %v1171
    %v1189 = vunpack.c.l.b16 %v1172
    %v1190 = vunpack.c.h.b16 %v1172
    %v1191 = vunpack.c.l.b16 %v1173
    %v1192 = vunpack.c.h.b16 %v1173
    %v1193 = vunpack.c.l.b16 %v1174
    %v1194 = vunpack.c.h.b16 %v1174
    %v1195 = vunpack.c.l.b16 %v1175
    %v1196 = vunpack.c.h.b16 %v1175
    %v1197 = vunpack.c.l.b16 %v1176
    %v1198 = vunpack.c.h.b16 %v1176
    %v1199 = vunpack.c.l.b16 %v1177
    %v1200 = vunpack.c.h.b16 %v1177
    %v1201 = vunpack.c.l.b16 %v1178
    %v1202 = vunpack.c.h.b16 %v1178
    %v1203 = vpack.c.b16 %v1187, %v1187
    %v1204 = vpack.c.b16 %v1188, %v1188
    %v1205 = vpack.c.b16 %v1189, %v1189
    %v1206 = vpack.c.b16 %v1190, %v1190
    %v1207 = vpack.c.b16 %v1191, %v1191
    %v1208 = vpack.c.b16 %v1192, %v1192
    %v1209 = vpack.c.b16 %v1193, %v1193
    %v1210 = vpack.c.b16 %v1194, %v1194
    %v1211 = vpack.c.b16 %v1195, %v1195
    %v1212 = vpack.c.b16 %v1196, %v1196
    %v1213 = vpack.c.b16 %v1197, %v1197
    %v1214 = vpack.c.b16 %v1198, %v1198
    %v1215 = vpack.c.b16 %v1199, %v1199
    %v1216 = vpack.c.b16 %v1200, %v1200
    %v1217 = vpack.c.b16 %v1201, %v1201
    %v1218 = vpack.c.b16 %v1202, %v1202
    %1235 = vst [vmem:[#allocation2 + $0x4] sm:$0xf] %v1203
    %1236 = vst [vmem:[#allocation2 + $0xc] sm:$0xf] %v1204
    %1237 = vst [vmem:[#allocation2 + $0x14] sm:$0xf] %v1205
    %1238 = vst [vmem:[#allocation2 + $0x1c] sm:$0xf] %v1206
    %1239 = vst [vmem:[#allocation2 + $0x24] sm:$0xf] %v1207
    %1240 = vst [vmem:[#allocation2 + $0x2c] sm:$0xf] %v1208
    %1241 = vst [vmem:[#allocation2 + $0x34] sm:$0xf] %v1209
    %1242 = vst [vmem:[#allocation2 + $0x3c] sm:$0xf] %v1210
    %1243 = vst [vmem:[#allocation2 + $0x44] sm:$0xf] %v1211
    %1244 = vst [vmem:[#allocation2 + $0x4c] sm:$0xf] %v1212
    %1245 = vst [vmem:[#allocation2 + $0x54] sm:$0xf] %v1213
    %1246 = vst [vmem:[#allocation2 + $0x5c] sm:$0xf] %v1214
    %1247 = vst [vmem:[#allocation2 + $0x64] sm:$0xf] %v1215
    %1248 = vst [vmem:[#allocation2 + $0x6c] sm:$0xf] %v1216
    %1249 = vst [vmem:[#allocation2 + $0x74] sm:$0xf] %v1217
    %1250 = vst [vmem:[#allocation2 + $0x7c] sm:$0xf] %v1218
    %v1251 = vld [vmem:[#allocation2] sm:$0xff]
    %v1252 = vld [vmem:[#allocation2 + $0x8] sm:$0xff]
    %v1253 = vld [vmem:[#allocation2 + $0x10] sm:$0xff]
    %v1254 = vld [vmem:[#allocation2 + $0x18] sm:$0xff]
    %v1255 = vld [vmem:[#allocation2 + $0x20] sm:$0xff]
    %v1256 = vld [vmem:[#allocation2 + $0x28] sm:$0xff]
    %v1257 = vld [vmem:[#allocation2 + $0x30] sm:$0xff]
    %v1258 = vld [vmem:[#allocation2 + $0x38] sm:$0xff]
    %v1259 = vld [vmem:[#allocation2 + $0x40] sm:$0xff]
    %v1260 = vld [vmem:[#allocation2 + $0x48] sm:$0xff]
    %v1261 = vld [vmem:[#allocation2 + $0x50] sm:$0xff]
    %v1262 = vld [vmem:[#allocation2 + $0x58] sm:$0xff]
    %v1263 = vld [vmem:[#allocation2 + $0x60] sm:$0xff]
    %v1264 = vld [vmem:[#allocation2 + $0x68] sm:$0xff]
    %v1265 = vld [vmem:[#allocation2 + $0x70] sm:$0xff]
    %v1266 = vld [vmem:[#allocation2 + $0x78] sm:$0xff]
    %v1267 = vld [vmem:[#allocation8] sm:$0xf]
    %v1268 = vld [vmem:[#allocation8 + $0x4] sm:$0xf]
    %v1269 = vld [vmem:[#allocation8 + $0x8] sm:$0xf]
    %v1270 = vld [vmem:[#allocation8 + $0xc] sm:$0xf]
    %v1271 = vld [vmem:[#allocation8 + $0x10] sm:$0xf]
    %v1272 = vld [vmem:[#allocation8 + $0x14] sm:$0xf]
    %v1273 = vld [vmem:[#allocation8 + $0x18] sm:$0xf]
    %v1274 = vld [vmem:[#allocation8 + $0x1c] sm:$0xf]
    %v1275 = vld [vmem:[#allocation8 + $0x20] sm:$0xf]
    %v1276 = vld [vmem:[#allocation8 + $0x24] sm:$0xf]
    %v1277 = vld [vmem:[#allocation8 + $0x28] sm:$0xf]
    %v1278 = vld [vmem:[#allocation8 + $0x2c] sm:$0xf]
    %v1279 = vld [vmem:[#allocation8 + $0x30] sm:$0xf]
    %v1280 = vld [vmem:[#allocation8 + $0x34] sm:$0xf]
    %v1281 = vld [vmem:[#allocation8 + $0x38] sm:$0xf]
    %v1282 = vld [vmem:[#allocation8 + $0x3c] sm:$0xf]
    %v1283 = vld [vmem:[#allocation8 + $0x40] sm:$0xf]
    %v1284 = vld [vmem:[#allocation8 + $0x44] sm:$0xf]
    %v1285 = vld [vmem:[#allocation8 + $0x48] sm:$0xf]
    %v1286 = vld [vmem:[#allocation8 + $0x4c] sm:$0xf]
    %v1287 = vld [vmem:[#allocation8 + $0x50] sm:$0xf]
    %v1288 = vld [vmem:[#allocation8 + $0x54] sm:$0xf]
    %v1289 = vld [vmem:[#allocation8 + $0x58] sm:$0xf]
    %v1290 = vld [vmem:[#allocation8 + $0x5c] sm:$0xf]
    %v1291 = vld [vmem:[#allocation8 + $0x60] sm:$0xf]
    %v1292 = vld [vmem:[#allocation8 + $0x64] sm:$0xf]
    %v1293 = vld [vmem:[#allocation8 + $0x68] sm:$0xf]
    %v1294 = vld [vmem:[#allocation8 + $0x6c] sm:$0xf]
    %v1295 = vld [vmem:[#allocation8 + $0x70] sm:$0xf]
    %v1296 = vld [vmem:[#allocation8 + $0x74] sm:$0xf]
    %v1297 = vld [vmem:[#allocation8 + $0x78] sm:$0xf]
    %v1298 = vld [vmem:[#allocation8 + $0x7c] sm:$0xf]
    %v1315 = vunpack.c.l.b16 %v1251
    %v1316 = vunpack.c.h.b16 %v1251
    %v1317 = vunpack.c.l.b16 %v1252
    %v1318 = vunpack.c.h.b16 %v1252
    %v1319 = vunpack.c.l.b16 %v1253
    %v1320 = vunpack.c.h.b16 %v1253
    %v1321 = vunpack.c.l.b16 %v1254
    %v1322 = vunpack.c.h.b16 %v1254
    %v1323 = vunpack.c.l.b16 %v1255
    %v1324 = vunpack.c.h.b16 %v1255
    %v1325 = vunpack.c.l.b16 %v1256
    %v1326 = vunpack.c.h.b16 %v1256
    %v1327 = vunpack.c.l.b16 %v1257
    %v1328 = vunpack.c.h.b16 %v1257
    %v1329 = vunpack.c.l.b16 %v1258
    %v1330 = vunpack.c.h.b16 %v1258
    %v1331 = vunpack.c.l.b16 %v1259
    %v1332 = vunpack.c.h.b16 %v1259
    %v1333 = vunpack.c.l.b16 %v1260
    %v1334 = vunpack.c.h.b16 %v1260
    %v1335 = vunpack.c.l.b16 %v1261
    %v1336 = vunpack.c.h.b16 %v1261
    %v1337 = vunpack.c.l.b16 %v1262
    %v1338 = vunpack.c.h.b16 %v1262
    %v1339 = vunpack.c.l.b16 %v1263
    %v1340 = vunpack.c.h.b16 %v1263
    %v1341 = vunpack.c.l.b16 %v1264
    %v1342 = vunpack.c.h.b16 %v1264
    %v1343 = vunpack.c.l.b16 %v1265
    %v1344 = vunpack.c.h.b16 %v1265
    %v1345 = vunpack.c.l.b16 %v1266
    %v1346 = vunpack.c.h.b16 %v1266
    %v1347 = vpack.c.b16 %v1317, %v1315
    %v1348 = vpack.c.b16 %v1318, %v1316
    %v1349 = vpack.c.b16 %v1321, %v1319
    %v1350 = vpack.c.b16 %v1322, %v1320
    %v1351 = vpack.c.b16 %v1325, %v1323
    %v1352 = vpack.c.b16 %v1326, %v1324
    %v1353 = vpack.c.b16 %v1329, %v1327
    %v1354 = vpack.c.b16 %v1330, %v1328
    %v1355 = vpack.c.b16 %v1333, %v1331
    %v1356 = vpack.c.b16 %v1334, %v1332
    %v1357 = vpack.c.b16 %v1337, %v1335
    %v1358 = vpack.c.b16 %v1338, %v1336
    %v1359 = vpack.c.b16 %v1341, %v1339
    %v1360 = vpack.c.b16 %v1342, %v1340
    %v1361 = vpack.c.b16 %v1345, %v1343
    %v1362 = vpack.c.b16 %v1346, %v1344
    %v1411 = vunpack.c.l.b16 %v1267
    %v1412 = vunpack.c.l.b16 %v1268
    %v1413 = vunpack.c.l.b16 %v1269
    %v1414 = vunpack.c.l.b16 %v1270
    %v1415 = vunpack.c.l.b16 %v1271
    %v1416 = vunpack.c.l.b16 %v1272
    %v1417 = vunpack.c.l.b16 %v1273
    %v1418 = vunpack.c.l.b16 %v1274
    %v1419 = vunpack.c.l.b16 %v1275
    %v1420 = vunpack.c.l.b16 %v1276
    %v1421 = vunpack.c.l.b16 %v1277
    %v1422 = vunpack.c.l.b16 %v1278
    %v1423 = vunpack.c.l.b16 %v1279
    %v1424 = vunpack.c.l.b16 %v1280
    %v1425 = vunpack.c.l.b16 %v1281
    %v1426 = vunpack.c.l.b16 %v1282
    %v1427 = vunpack.c.l.b16 %v1283
    %v1428 = vunpack.c.l.b16 %v1284
    %v1429 = vunpack.c.l.b16 %v1285
    %v1430 = vunpack.c.l.b16 %v1286
    %v1431 = vunpack.c.l.b16 %v1287
    %v1432 = vunpack.c.l.b16 %v1288
    %v1433 = vunpack.c.l.b16 %v1289
    %v1434 = vunpack.c.l.b16 %v1290
    %v1435 = vunpack.c.l.b16 %v1291
    %v1436 = vunpack.c.l.b16 %v1292
    %v1437 = vunpack.c.l.b16 %v1293
    %v1438 = vunpack.c.l.b16 %v1294
    %v1439 = vunpack.c.l.b16 %v1295
    %v1440 = vunpack.c.l.b16 %v1296
    %v1441 = vunpack.c.l.b16 %v1297
    %v1442 = vunpack.c.l.b16 %v1298
    %v1443 = vpack.c.b16 %v1412, %v1411
    %v1444 = vpack.c.b16 %v1414, %v1413
    %v1445 = vpack.c.b16 %v1416, %v1415
    %v1446 = vpack.c.b16 %v1418, %v1417
    %v1447 = vpack.c.b16 %v1420, %v1419
    %v1448 = vpack.c.b16 %v1422, %v1421
    %v1449 = vpack.c.b16 %v1424, %v1423
    %v1450 = vpack.c.b16 %v1426, %v1425
    %v1451 = vpack.c.b16 %v1428, %v1427
    %v1452 = vpack.c.b16 %v1430, %v1429
    %v1453 = vpack.c.b16 %v1432, %v1431
    %v1454 = vpack.c.b16 %v1434, %v1433
    %v1455 = vpack.c.b16 %v1436, %v1435
    %v1456 = vpack.c.b16 %v1438, %v1437
    %v1457 = vpack.c.b16 %v1440, %v1439
    %v1458 = vpack.c.b16 %v1442, %v1441
    %1475 = vmatprep.subr.bf16.mxu0 0
    %1476 = vmatpush1.bf16.msra.mxu0 %v1450
    %1477 = vmatprep.subr.bf16.mxu0 0
    %1478 = vmatpush1.bf16.msra.mxu0 %v1449
    %1479 = vmatprep.subr.bf16.mxu0 0
    %1480 = vmatpush1.bf16.msra.mxu0 %v1448
    %1481 = vmatprep.subr.bf16.mxu0 0
    %1482 = vmatpush1.bf16.msra.mxu0 %v1447
    %1483 = vmatprep.subr.bf16.mxu0 0
    %1484 = vmatpush1.bf16.msra.mxu0 %v1446
    %1485 = vmatprep.subr.bf16.mxu0 0
    %1486 = vmatpush1.bf16.msra.mxu0 %v1445
    %1487 = vmatprep.subr.bf16.mxu0 0
    %1488 = vmatpush1.bf16.msra.mxu0 %v1444
    %1489 = vmatprep.subr.bf16.mxu0 0
    %1490 = vmatpush1.bf16.msra.mxu0 %v1443
    %1491 = vmatprep.subr.bf16.mxu0 0
    %1492 = vmatpush2.bf16.msra.mxu0 %v1458
    %1493 = vmatprep.subr.bf16.mxu0 0
    %1494 = vmatpush2.bf16.msra.mxu0 %v1457
    %1495 = vmatprep.subr.bf16.mxu0 0
    %1496 = vmatpush2.bf16.msra.mxu0 %v1456
    %1497 = vmatprep.subr.bf16.mxu0 0
    %1498 = vmatpush2.bf16.msra.mxu0 %v1455
    %1499 = vmatprep.subr.bf16.mxu0 0
    %1500 = vmatpush2.bf16.msra.mxu0 %v1454
    %1501 = vmatprep.subr.bf16.mxu0 0
    %1502 = vmatpush2.bf16.msra.mxu0 %v1453
    %1503 = vmatprep.subr.bf16.mxu0 0
    %1504 = vmatpush2.bf16.msra.mxu0 %v1452
    %1505 = vmatprep.subr.bf16.mxu0 0
    %1506 = vmatpush2.bf16.msra.mxu0 %v1451
    %1507 = vmatprep.mubr.bf16.mxu0 %v1348
    %1508 = vmatmul.mubr.bf16.gmra.mxu0 %v1347
    %v1509 = vpop.f32.mrf.mxu0
    %v1510 = vadd.f32 0.0, %v1509
    %v1511 = vpop.f32.mrf.mxu0
    %v1512 = vpop.f32.mrf.mxu0
    %v1513 = vadd.f32 0.0, %v1512
    %v1514 = vpop.f32.mrf.mxu0
    %1515 = vmatprep.mubr.bf16.mxu0 %v1350
    %1516 = vmatmul.mubr.bf16.gmra.mxu0 %v1349
    %v1517 = vpop.f32.mrf.mxu0
    %v1518 = vadd.f32 0.0, %v1517
    %v1519 = vpop.f32.mrf.mxu0
    %v1520 = vpop.f32.mrf.mxu0
    %v1521 = vadd.f32 0.0, %v1520
    %v1522 = vpop.f32.mrf.mxu0
    %1523 = vmatprep.mubr.bf16.mxu0 %v1352
    %1524 = vmatmul.mubr.bf16.gmra.mxu0 %v1351
    %v1525 = vpop.f32.mrf.mxu0
    %v1526 = vadd.f32 0.0, %v1525
    %v1527 = vpop.f32.mrf.mxu0
    %v1528 = vpop.f32.mrf.mxu0
    %v1529 = vadd.f32 0.0, %v1528
    %v1530 = vpop.f32.mrf.mxu0
    %1531 = vmatprep.mubr.bf16.mxu0 %v1354
    %1532 = vmatmul.mubr.bf16.gmra.mxu0 %v1353
    %v1533 = vpop.f32.mrf.mxu0
    %v1534 = vadd.f32 0.0, %v1533
    %v1535 = vpop.f32.mrf.mxu0
    %v1536 = vpop.f32.mrf.mxu0
    %v1537 = vadd.f32 0.0, %v1536
    %v1538 = vpop.f32.mrf.mxu0
    %1539 = vmatprep.mubr.bf16.mxu0 %v1356
    %1540 = vmatmul.mubr.bf16.gmra.mxu0 %v1355
    %v1541 = vpop.f32.mrf.mxu0
    %v1542 = vadd.f32 0.0, %v1541
    %v1543 = vpop.f32.mrf.mxu0
    %v1544 = vpop.f32.mrf.mxu0
    %v1545 = vadd.f32 0.0, %v1544
    %v1546 = vpop.f32.mrf.mxu0
    %1547 = vmatprep.mubr.bf16.mxu0 %v1358
    %1548 = vmatmul.mubr.bf16.gmra.mxu0 %v1357
    %v1549 = vpop.f32.mrf.mxu0
    %v1550 = vadd.f32 0.0, %v1549
    %v1551 = vpop.f32.mrf.mxu0
    %v1552 = vpop.f32.mrf.mxu0
    %v1553 = vadd.f32 0.0, %v1552
    %v1554 = vpop.f32.mrf.mxu0
    %1555 = vmatprep.mubr.bf16.mxu0 %v1360
    %1556 = vmatmul.mubr.bf16.gmra.mxu0 %v1359
    %v1557 = vpop.f32.mrf.mxu0
    %v1558 = vadd.f32 0.0, %v1557
    %v1559 = vpop.f32.mrf.mxu0
    %v1560 = vpop.f32.mrf.mxu0
    %v1561 = vadd.f32 0.0, %v1560
    %v1562 = vpop.f32.mrf.mxu0
    %1563 = vmatprep.mubr.bf16.mxu0 %v1362
    %1564 = vmatmul.mubr.bf16.gmra.mxu0 %v1361
    %v1565 = vpop.f32.mrf.mxu0
    %v1566 = vadd.f32 0.0, %v1565
    %v1567 = vpop.f32.mrf.mxu0
    %v1568 = vpop.f32.mrf.mxu0
    %v1569 = vadd.f32 0.0, %v1568
    %v1570 = vpop.f32.mrf.mxu0
    %1571 = vdwg.mxu0
    %v1572 = vld [vmem:[%s7] sm:$0x1]
    %v1574 = vlaneseq
    %v1575 = vshrl.u32 %v1574, 7
    %v1576 = vsub.s32 0, %v1575
    %v1577 = vrot.slane %v1572, %v1576
    %v1579 = vmul.f32 %v1510, %v1577
    %v1580 = vmul.f32 %v1513, %v1577
    %v1581 = vmul.f32 %v1518, %v1577
    %v1582 = vmul.f32 %v1521, %v1577
    %v1583 = vmul.f32 %v1526, %v1577
    %v1584 = vmul.f32 %v1529, %v1577
    %v1585 = vmul.f32 %v1534, %v1577
    %v1586 = vmul.f32 %v1537, %v1577
    %v1587 = vmul.f32 %v1542, %v1577
    %v1588 = vmul.f32 %v1545, %v1577
    %v1589 = vmul.f32 %v1550, %v1577
    %v1590 = vmul.f32 %v1553, %v1577
    %v1591 = vmul.f32 %v1558, %v1577
    %v1592 = vmul.f32 %v1561, %v1577
    %v1593 = vmul.f32 %v1566, %v1577
    %v1594 = vmul.f32 %v1569, %v1577
    %v1595 = vld [vmem:[%s8] sm:$0x1]
    %v1597 = vlaneseq
    %v1598 = vshrl.u32 %v1597, 7
    %v1599 = vsub.s32 0, %v1598
    %v1600 = vrot.slane %v1595, %v1599
    %v1602 = vadd.f32 %v1579, %v1600
    %v1603 = vadd.f32 %v1580, %v1600
    %v1604 = vadd.f32 %v1581, %v1600
    %v1605 = vadd.f32 %v1582, %v1600
    %v1606 = vadd.f32 %v1583, %v1600
    %v1607 = vadd.f32 %v1584, %v1600
    %v1608 = vadd.f32 %v1585, %v1600
    %v1609 = vadd.f32 %v1586, %v1600
    %v1610 = vadd.f32 %v1587, %v1600
    %v1611 = vadd.f32 %v1588, %v1600
    %v1612 = vadd.f32 %v1589, %v1600
    %v1613 = vadd.f32 %v1590, %v1600
    %v1614 = vadd.f32 %v1591, %v1600
    %v1615 = vadd.f32 %v1592, %v1600
    %v1616 = vadd.f32 %v1593, %v1600
    %v1617 = vadd.f32 %v1594, %v1600
    %v1618 = vmul.f32 %v1602, %v821
    %v1619 = vmul.f32 %v1603, %v826
    %v1620 = vmul.f32 %v1604, %v831
    %v1621 = vmul.f32 %v1605, %v836
    %v1622 = vmul.f32 %v1606, %v841
    %v1623 = vmul.f32 %v1607, %v846
    %v1624 = vmul.f32 %v1608, %v851
    %v1625 = vmul.f32 %v1609, %v856
    %v1626 = vmul.f32 %v1610, %v861
    %v1627 = vmul.f32 %v1611, %v866
    %v1628 = vmul.f32 %v1612, %v871
    %v1629 = vmul.f32 %v1613, %v876
    %v1630 = vmul.f32 %v1614, %v881
    %v1631 = vmul.f32 %v1615, %v886
    %v1632 = vmul.f32 %v1616, %v891
    %v1633 = vmul.f32 %v1617, %v896
    %v1634 = vmax.f32 %v1618, 0.0
    %v1635 = vmax.f32 %v1619, 0.0
    %v1636 = vmax.f32 %v1620, 0.0
    %v1637 = vmax.f32 %v1621, 0.0
    %v1638 = vmax.f32 %v1622, 0.0
    %v1639 = vmax.f32 %v1623, 0.0
    %v1640 = vmax.f32 %v1624, 0.0
    %v1641 = vmax.f32 %v1625, 0.0
    %v1642 = vmax.f32 %v1626, 0.0
    %v1643 = vmax.f32 %v1627, 0.0
    %v1644 = vmax.f32 %v1628, 0.0
    %v1645 = vmax.f32 %v1629, 0.0
    %v1646 = vmax.f32 %v1630, 0.0
    %v1647 = vmax.f32 %v1631, 0.0
    %v1648 = vmax.f32 %v1632, 0.0
    %v1649 = vmax.f32 %v1633, 0.0
    %v1650 = vpack.c.bf16 %v1635, %v1634
    %v1651 = vpack.c.bf16 %v1637, %v1636
    %v1652 = vpack.c.bf16 %v1639, %v1638
    %v1653 = vpack.c.bf16 %v1641, %v1640
    %v1654 = vpack.c.bf16 %v1643, %v1642
    %v1655 = vpack.c.bf16 %v1645, %v1644
    %v1656 = vpack.c.bf16 %v1647, %v1646
    %v1657 = vpack.c.bf16 %v1649, %v1648
    %v1666 = vunpack.c.l.b16 %v1650
    %v1667 = vunpack.c.h.b16 %v1650
    %v1668 = vunpack.c.l.b16 %v1651
    %v1669 = vunpack.c.h.b16 %v1651
    %v1670 = vunpack.c.l.b16 %v1652
    %v1671 = vunpack.c.h.b16 %v1652
    %v1672 = vunpack.c.l.b16 %v1653
    %v1673 = vunpack.c.h.b16 %v1653
    %v1674 = vunpack.c.l.b16 %v1654
    %v1675 = vunpack.c.h.b16 %v1654
    %v1676 = vunpack.c.l.b16 %v1655
    %v1677 = vunpack.c.h.b16 %v1655
    %v1678 = vunpack.c.l.b16 %v1656
    %v1679 = vunpack.c.h.b16 %v1656
    %v1680 = vunpack.c.l.b16 %v1657
    %v1681 = vunpack.c.h.b16 %v1657
    %v1682 = vpack.c.b16 %v1666, %v1666
    %v1683 = vpack.c.b16 %v1667, %v1667
    %v1684 = vpack.c.b16 %v1668, %v1668
    %v1685 = vpack.c.b16 %v1669, %v1669
    %v1686 = vpack.c.b16 %v1670, %v1670
    %v1687 = vpack.c.b16 %v1671, %v1671
    %v1688 = vpack.c.b16 %v1672, %v1672
    %v1689 = vpack.c.b16 %v1673, %v1673
    %v1690 = vpack.c.b16 %v1674, %v1674
    %v1691 = vpack.c.b16 %v1675, %v1675
    %v1692 = vpack.c.b16 %v1676, %v1676
    %v1693 = vpack.c.b16 %v1677, %v1677
    %v1694 = vpack.c.b16 %v1678, %v1678
    %v1695 = vpack.c.b16 %v1679, %v1679
    %v1696 = vpack.c.b16 %v1680, %v1680
    %v1697 = vpack.c.b16 %v1681, %v1681
    %1714 = vst [vmem:[#allocation2] sm:$0xf] %v1682
    %1715 = vst [vmem:[#allocation2 + $0x8] sm:$0xf] %v1683
    %1716 = vst [vmem:[#allocation2 + $0x10] sm:$0xf] %v1684
    %1717 = vst [vmem:[#allocation2 + $0x18] sm:$0xf] %v1685
    %1718 = vst [vmem:[#allocation2 + $0x20] sm:$0xf] %v1686
    %1719 = vst [vmem:[#allocation2 + $0x28] sm:$0xf] %v1687
    %1720 = vst [vmem:[#allocation2 + $0x30] sm:$0xf] %v1688
    %1721 = vst [vmem:[#allocation2 + $0x38] sm:$0xf] %v1689
    %1722 = vst [vmem:[#allocation2 + $0x40] sm:$0xf] %v1690
    %1723 = vst [vmem:[#allocation2 + $0x48] sm:$0xf] %v1691
    %1724 = vst [vmem:[#allocation2 + $0x50] sm:$0xf] %v1692
    %1725 = vst [vmem:[#allocation2 + $0x58] sm:$0xf] %v1693
    %1726 = vst [vmem:[#allocation2 + $0x60] sm:$0xf] %v1694
    %1727 = vst [vmem:[#allocation2 + $0x68] sm:$0xf] %v1695
    %1728 = vst [vmem:[#allocation2 + $0x70] sm:$0xf] %v1696
    %1729 = vst [vmem:[#allocation2 + $0x78] sm:$0xf] %v1697
    %v1730 = vld [vmem:[#allocation2] sm:$0xf]
    %v1731 = vld [vmem:[#allocation2 + $0x8] sm:$0xf]
    %v1732 = vld [vmem:[#allocation2 + $0x10] sm:$0xf]
    %v1733 = vld [vmem:[#allocation2 + $0x18] sm:$0xf]
    %v1734 = vld [vmem:[#allocation2 + $0x20] sm:$0xf]
    %v1735 = vld [vmem:[#allocation2 + $0x28] sm:$0xf]
    %v1736 = vld [vmem:[#allocation2 + $0x30] sm:$0xf]
    %v1737 = vld [vmem:[#allocation2 + $0x38] sm:$0xf]
    %v1738 = vld [vmem:[#allocation2 + $0x40] sm:$0xf]
    %v1739 = vld [vmem:[#allocation2 + $0x48] sm:$0xf]
    %v1740 = vld [vmem:[#allocation2 + $0x50] sm:$0xf]
    %v1741 = vld [vmem:[#allocation2 + $0x58] sm:$0xf]
    %v1742 = vld [vmem:[#allocation2 + $0x60] sm:$0xf]
    %v1743 = vld [vmem:[#allocation2 + $0x68] sm:$0xf]
    %v1744 = vld [vmem:[#allocation2 + $0x70] sm:$0xf]
    %v1745 = vld [vmem:[#allocation2 + $0x78] sm:$0xf]
    %v1762 = vunpack.c.l.b16 %v1730
    %v1763 = vunpack.c.l.b16 %v1731
    %v1764 = vunpack.c.l.b16 %v1732
    %v1765 = vunpack.c.l.b16 %v1733
    %v1766 = vunpack.c.l.b16 %v1734
    %v1767 = vunpack.c.l.b16 %v1735
    %v1768 = vunpack.c.l.b16 %v1736
    %v1769 = vunpack.c.l.b16 %v1737
    %v1770 = vunpack.c.l.b16 %v1738
    %v1771 = vunpack.c.l.b16 %v1739
    %v1772 = vunpack.c.l.b16 %v1740
    %v1773 = vunpack.c.l.b16 %v1741
    %v1774 = vunpack.c.l.b16 %v1742
    %v1775 = vunpack.c.l.b16 %v1743
    %v1776 = vunpack.c.l.b16 %v1744
    %v1777 = vunpack.c.l.b16 %v1745
    %v1778 = vpack.c.b16 %v1763, %v1762
    %v1779 = vpack.c.b16 %v1765, %v1764
    %v1780 = vpack.c.b16 %v1767, %v1766
    %v1781 = vpack.c.b16 %v1769, %v1768
    %v1782 = vpack.c.b16 %v1771, %v1770
    %v1783 = vpack.c.b16 %v1773, %v1772
    %v1784 = vpack.c.b16 %v1775, %v1774
    %v1785 = vpack.c.b16 %v1777, %v1776
    %1794 = vmatprep.subr.bf16.mxu0 0
    %1795 = vmatpush1.bf16.msra.mxu0 %v1785
    %1796 = vmatprep.subr.bf16.mxu0 0
    %1797 = vmatpush1.bf16.msra.mxu0 %v1784
    %1798 = vmatprep.subr.bf16.mxu0 0
    %1799 = vmatpush1.bf16.msra.mxu0 %v1783
    %1800 = vmatprep.subr.bf16.mxu0 0
    %1801 = vmatpush1.bf16.msra.mxu0 %v1782
    %1802 = vmatprep.subr.bf16.mxu0 0
    %1803 = vmatpush1.bf16.msra.mxu0 %v1781
    %1804 = vmatprep.subr.bf16.mxu0 0
    %1805 = vmatpush1.bf16.msra.mxu0 %v1780
    %1806 = vmatprep.subr.bf16.mxu0 0
    %1807 = vmatpush1.bf16.msra.mxu0 %v1779
    %1808 = vmatprep.subr.bf16.mxu0 0
    %1809 = vmatpush1.bf16.msra.mxu0 %v1778
    %1810 = vmatprep.subr.bf16.mxu0 0
    %1811 = vmatpush2.bf16.msra.mxu0 0
    %1812 = vmatprep.subr.bf16.mxu0 0
    %1813 = vmatpush2.bf16.msra.mxu0 0
    %1814 = vmatprep.subr.bf16.mxu0 0
    %1815 = vmatpush2.bf16.msra.mxu0 0
    %1816 = vmatprep.subr.bf16.mxu0 0
    %1817 = vmatpush2.bf16.msra.mxu0 0
    %1818 = vmatprep.subr.bf16.mxu0 0
    %1819 = vmatpush2.bf16.msra.mxu0 0
    %1820 = vmatprep.subr.bf16.mxu0 0
    %1821 = vmatpush2.bf16.msra.mxu0 0
    %1822 = vmatprep.subr.bf16.mxu0 0
    %1823 = vmatpush2.bf16.msra.mxu0 0
    %1824 = vmatprep.subr.bf16.mxu0 0
    %1825 = vmatpush2.bf16.msra.mxu0 0
    %1826 = vmatprep.mubr.bf16.mxu0 0
    %1827 = vmatmul.mubr.bf16.gmra.mxu0 %v210
    %v1828 = vpop.f32.mrf.mxu0
    %v1829 = vadd.f32 0.0, %v1828
    %v1830 = vpop.f32.mrf.mxu0
    %v1831 = vpop.f32.mrf.mxu0
    %v1832 = vadd.f32 0.0, %v1831
    %v1833 = vpop.f32.mrf.mxu0
    %1834 = vmatprep.mubr.bf16.mxu0 0
    %1835 = vmatmul.mubr.bf16.gmra.mxu0 %v211
    %v1836 = vpop.f32.mrf.mxu0
    %v1837 = vadd.f32 0.0, %v1836
    %v1838 = vpop.f32.mrf.mxu0
    %v1839 = vpop.f32.mrf.mxu0
    %v1840 = vadd.f32 0.0, %v1839
    %v1841 = vpop.f32.mrf.mxu0
    %1842 = vmatprep.mubr.bf16.mxu0 0
    %1843 = vmatmul.mubr.bf16.gmra.mxu0 %v212
    %v1844 = vpop.f32.mrf.mxu0
    %v1845 = vadd.f32 0.0, %v1844
    %v1846 = vpop.f32.mrf.mxu0
    %v1847 = vpop.f32.mrf.mxu0
    %v1848 = vadd.f32 0.0, %v1847
    %v1849 = vpop.f32.mrf.mxu0
    %1850 = vmatprep.mubr.bf16.mxu0 0
    %1851 = vmatmul.mubr.bf16.gmra.mxu0 %v213
    %v1852 = vpop.f32.mrf.mxu0
    %v1853 = vadd.f32 0.0, %v1852
    %v1854 = vpop.f32.mrf.mxu0
    %v1855 = vpop.f32.mrf.mxu0
    %v1856 = vadd.f32 0.0, %v1855
    %v1857 = vpop.f32.mrf.mxu0
    %1858 = vmatprep.mubr.bf16.mxu0 0
    %1859 = vmatmul.mubr.bf16.gmra.mxu0 %v214
    %v1860 = vpop.f32.mrf.mxu0
    %v1861 = vadd.f32 0.0, %v1860
    %v1862 = vpop.f32.mrf.mxu0
    %v1863 = vpop.f32.mrf.mxu0
    %v1864 = vadd.f32 0.0, %v1863
    %v1865 = vpop.f32.mrf.mxu0
    %1866 = vmatprep.mubr.bf16.mxu0 0
    %1867 = vmatmul.mubr.bf16.gmra.mxu0 %v215
    %v1868 = vpop.f32.mrf.mxu0
    %v1869 = vadd.f32 0.0, %v1868
    %v1870 = vpop.f32.mrf.mxu0
    %v1871 = vpop.f32.mrf.mxu0
    %v1872 = vadd.f32 0.0, %v1871
    %v1873 = vpop.f32.mrf.mxu0
    %1874 = vmatprep.mubr.bf16.mxu0 0
    %1875 = vmatmul.mubr.bf16.gmra.mxu0 %v216
    %v1876 = vpop.f32.mrf.mxu0
    %v1877 = vadd.f32 0.0, %v1876
    %v1878 = vpop.f32.mrf.mxu0
    %v1879 = vpop.f32.mrf.mxu0
    %v1880 = vadd.f32 0.0, %v1879
    %v1881 = vpop.f32.mrf.mxu0
    %1882 = vmatprep.mubr.bf16.mxu0 0
    %1883 = vmatmul.mubr.bf16.gmra.mxu0 %v217
    %v1884 = vpop.f32.mrf.mxu0
    %v1885 = vadd.f32 0.0, %v1884
    %v1886 = vpop.f32.mrf.mxu0
    %v1887 = vpop.f32.mrf.mxu0
    %v1888 = vadd.f32 0.0, %v1887
    %v1889 = vpop.f32.mrf.mxu0
    %1890 = vdwg.mxu0
    %v1891 = vpack.c.bf16 %v1832, %v1829
    %v1892 = vpack.c.bf16 %v1840, %v1837
    %v1893 = vpack.c.bf16 %v1848, %v1845
    %v1894 = vpack.c.bf16 %v1856, %v1853
    %v1895 = vpack.c.bf16 %v1864, %v1861
    %v1896 = vpack.c.bf16 %v1872, %v1869
    %v1897 = vpack.c.bf16 %v1880, %v1877
    %v1898 = vpack.c.bf16 %v1888, %v1885
    %v1907 = vunpack.c.l.b16 %v1891
    %v1908 = vunpack.c.h.b16 %v1891
    %v1909 = vunpack.c.l.b16 %v1892
    %v1910 = vunpack.c.h.b16 %v1892
    %v1911 = vunpack.c.l.b16 %v1893
    %v1912 = vunpack.c.h.b16 %v1893
    %v1913 = vunpack.c.l.b16 %v1894
    %v1914 = vunpack.c.h.b16 %v1894
    %v1915 = vunpack.c.l.b16 %v1895
    %v1916 = vunpack.c.h.b16 %v1895
    %v1917 = vunpack.c.l.b16 %v1896
    %v1918 = vunpack.c.h.b16 %v1896
    %v1919 = vunpack.c.l.b16 %v1897
    %v1920 = vunpack.c.h.b16 %v1897
    %v1921 = vunpack.c.l.b16 %v1898
    %v1922 = vunpack.c.h.b16 %v1898
    %v1923 = vpack.c.b16 %v1907, %v1907
    %v1924 = vpack.c.b16 %v1908, %v1908
    %v1925 = vpack.c.b16 %v1909, %v1909
    %v1926 = vpack.c.b16 %v1910, %v1910
    %v1927 = vpack.c.b16 %v1911, %v1911
    %v1928 = vpack.c.b16 %v1912, %v1912
    %v1929 = vpack.c.b16 %v1913, %v1913
    %v1930 = vpack.c.b16 %v1914, %v1914
    %v1931 = vpack.c.b16 %v1915, %v1915
    %v1932 = vpack.c.b16 %v1916, %v1916
    %v1933 = vpack.c.b16 %v1917, %v1917
    %v1934 = vpack.c.b16 %v1918, %v1918
    %v1935 = vpack.c.b16 %v1919, %v1919
    %v1936 = vpack.c.b16 %v1920, %v1920
    %v1937 = vpack.c.b16 %v1921, %v1921
    %v1938 = vpack.c.b16 %v1922, %v1922
    %1955 = vst [vmem:[#allocation2 + $0x4] sm:$0xf] %v1923
    %1956 = vst [vmem:[#allocation2 + $0xc] sm:$0xf] %v1924
    %1957 = vst [vmem:[#allocation2 + $0x14] sm:$0xf] %v1925
    %1958 = vst [vmem:[#allocation2 + $0x1c] sm:$0xf] %v1926
    %1959 = vst [vmem:[#allocation2 + $0x24] sm:$0xf] %v1927
    %1960 = vst [vmem:[#allocation2 + $0x2c] sm:$0xf] %v1928
    %1961 = vst [vmem:[#allocation2 + $0x34] sm:$0xf] %v1929
    %1962 = vst [vmem:[#allocation2 + $0x3c] sm:$0xf] %v1930
    %1963 = vst [vmem:[#allocation2 + $0x44] sm:$0xf] %v1931
    %1964 = vst [vmem:[#allocation2 + $0x4c] sm:$0xf] %v1932
    %1965 = vst [vmem:[#allocation2 + $0x54] sm:$0xf] %v1933
    %1966 = vst [vmem:[#allocation2 + $0x5c] sm:$0xf] %v1934
    %1967 = vst [vmem:[#allocation2 + $0x64] sm:$0xf] %v1935
    %1968 = vst [vmem:[#allocation2 + $0x6c] sm:$0xf] %v1936
    %1969 = vst [vmem:[#allocation2 + $0x74] sm:$0xf] %v1937
    %1970 = vst [vmem:[#allocation2 + $0x7c] sm:$0xf] %v1938
    %v1971 = vld [vmem:[#allocation2] sm:$0xff]
    %v1972 = vld [vmem:[#allocation2 + $0x8] sm:$0xff]
    %v1973 = vld [vmem:[#allocation2 + $0x10] sm:$0xff]
    %v1974 = vld [vmem:[#allocation2 + $0x18] sm:$0xff]
    %v1975 = vld [vmem:[#allocation2 + $0x20] sm:$0xff]
    %v1976 = vld [vmem:[#allocation2 + $0x28] sm:$0xff]
    %v1977 = vld [vmem:[#allocation2 + $0x30] sm:$0xff]
    %v1978 = vld [vmem:[#allocation2 + $0x38] sm:$0xff]
    %v1979 = vld [vmem:[#allocation2 + $0x40] sm:$0xff]
    %v1980 = vld [vmem:[#allocation2 + $0x48] sm:$0xff]
    %v1981 = vld [vmem:[#allocation2 + $0x50] sm:$0xff]
    %v1982 = vld [vmem:[#allocation2 + $0x58] sm:$0xff]
    %v1983 = vld [vmem:[#allocation2 + $0x60] sm:$0xff]
    %v1984 = vld [vmem:[#allocation2 + $0x68] sm:$0xff]
    %v1985 = vld [vmem:[#allocation2 + $0x70] sm:$0xff]
    %v1986 = vld [vmem:[#allocation2 + $0x78] sm:$0xff]
    %v1987 = vld [vmem:[#allocation9] sm:$0xf]
    %v1988 = vld [vmem:[#allocation9 + $0x4] sm:$0xf]
    %v1989 = vld [vmem:[#allocation9 + $0x8] sm:$0xf]
    %v1990 = vld [vmem:[#allocation9 + $0xc] sm:$0xf]
    %v1991 = vld [vmem:[#allocation9 + $0x10] sm:$0xf]
    %v1992 = vld [vmem:[#allocation9 + $0x14] sm:$0xf]
    %v1993 = vld [vmem:[#allocation9 + $0x18] sm:$0xf]
    %v1994 = vld [vmem:[#allocation9 + $0x1c] sm:$0xf]
    %v1995 = vld [vmem:[#allocation9 + $0x20] sm:$0xf]
    %v1996 = vld [vmem:[#allocation9 + $0x24] sm:$0xf]
    %v1997 = vld [vmem:[#allocation9 + $0x28] sm:$0xf]
    %v1998 = vld [vmem:[#allocation9 + $0x2c] sm:$0xf]
    %v1999 = vld [vmem:[#allocation9 + $0x30] sm:$0xf]
    %v2000 = vld [vmem:[#allocation9 + $0x34] sm:$0xf]
    %v2001 = vld [vmem:[#allocation9 + $0x38] sm:$0xf]
    %v2002 = vld [vmem:[#allocation9 + $0x3c] sm:$0xf]
    %v2003 = vld [vmem:[#allocation9 + $0x40] sm:$0xf]
    %v2004 = vld [vmem:[#allocation9 + $0x44] sm:$0xf]
    %v2005 = vld [vmem:[#allocation9 + $0x48] sm:$0xf]
    %v2006 = vld [vmem:[#allocation9 + $0x4c] sm:$0xf]
    %v2007 = vld [vmem:[#allocation9 + $0x50] sm:$0xf]
    %v2008 = vld [vmem:[#allocation9 + $0x54] sm:$0xf]
    %v2009 = vld [vmem:[#allocation9 + $0x58] sm:$0xf]
    %v2010 = vld [vmem:[#allocation9 + $0x5c] sm:$0xf]
    %v2011 = vld [vmem:[#allocation9 + $0x60] sm:$0xf]
    %v2012 = vld [vmem:[#allocation9 + $0x64] sm:$0xf]
    %v2013 = vld [vmem:[#allocation9 + $0x68] sm:$0xf]
    %v2014 = vld [vmem:[#allocation9 + $0x6c] sm:$0xf]
    %v2015 = vld [vmem:[#allocation9 + $0x70] sm:$0xf]
    %v2016 = vld [vmem:[#allocation9 + $0x74] sm:$0xf]
    %v2017 = vld [vmem:[#allocation9 + $0x78] sm:$0xf]
    %v2018 = vld [vmem:[#allocation9 + $0x7c] sm:$0xf]
    %v2035 = vunpack.c.l.b16 %v1971
    %v2036 = vunpack.c.h.b16 %v1971
    %v2037 = vunpack.c.l.b16 %v1972
    %v2038 = vunpack.c.h.b16 %v1972
    %v2039 = vunpack.c.l.b16 %v1973
    %v2040 = vunpack.c.h.b16 %v1973
    %v2041 = vunpack.c.l.b16 %v1974
    %v2042 = vunpack.c.h.b16 %v1974
    %v2043 = vunpack.c.l.b16 %v1975
    %v2044 = vunpack.c.h.b16 %v1975
    %v2045 = vunpack.c.l.b16 %v1976
    %v2046 = vunpack.c.h.b16 %v1976
    %v2047 = vunpack.c.l.b16 %v1977
    %v2048 = vunpack.c.h.b16 %v1977
    %v2049 = vunpack.c.l.b16 %v1978
    %v2050 = vunpack.c.h.b16 %v1978
    %v2051 = vunpack.c.l.b16 %v1979
    %v2052 = vunpack.c.h.b16 %v1979
    %v2053 = vunpack.c.l.b16 %v1980
    %v2054 = vunpack.c.h.b16 %v1980
    %v2055 = vunpack.c.l.b16 %v1981
    %v2056 = vunpack.c.h.b16 %v1981
    %v2057 = vunpack.c.l.b16 %v1982
    %v2058 = vunpack.c.h.b16 %v1982
    %v2059 = vunpack.c.l.b16 %v1983
    %v2060 = vunpack.c.h.b16 %v1983
    %v2061 = vunpack.c.l.b16 %v1984
    %v2062 = vunpack.c.h.b16 %v1984
    %v2063 = vunpack.c.l.b16 %v1985
    %v2064 = vunpack.c.h.b16 %v1985
    %v2065 = vunpack.c.l.b16 %v1986
    %v2066 = vunpack.c.h.b16 %v1986
    %v2067 = vpack.c.b16 %v2037, %v2035
    %v2068 = vpack.c.b16 %v2038, %v2036
    %v2069 = vpack.c.b16 %v2041, %v2039
    %v2070 = vpack.c.b16 %v2042, %v2040
    %v2071 = vpack.c.b16 %v2045, %v2043
    %v2072 = vpack.c.b16 %v2046, %v2044
    %v2073 = vpack.c.b16 %v2049, %v2047
    %v2074 = vpack.c.b16 %v2050, %v2048
    %v2075 = vpack.c.b16 %v2053, %v2051
    %v2076 = vpack.c.b16 %v2054, %v2052
    %v2077 = vpack.c.b16 %v2057, %v2055
    %v2078 = vpack.c.b16 %v2058, %v2056
    %v2079 = vpack.c.b16 %v2061, %v2059
    %v2080 = vpack.c.b16 %v2062, %v2060
    %v2081 = vpack.c.b16 %v2065, %v2063
    %v2082 = vpack.c.b16 %v2066, %v2064
    %v2131 = vunpack.c.l.b16 %v1987
    %v2132 = vunpack.c.l.b16 %v1988
    %v2133 = vunpack.c.l.b16 %v1989
    %v2134 = vunpack.c.l.b16 %v1990
    %v2135 = vunpack.c.l.b16 %v1991
    %v2136 = vunpack.c.l.b16 %v1992
    %v2137 = vunpack.c.l.b16 %v1993
    %v2138 = vunpack.c.l.b16 %v1994
    %v2139 = vunpack.c.l.b16 %v1995
    %v2140 = vunpack.c.l.b16 %v1996
    %v2141 = vunpack.c.l.b16 %v1997
    %v2142 = vunpack.c.l.b16 %v1998
    %v2143 = vunpack.c.l.b16 %v1999
    %v2144 = vunpack.c.l.b16 %v2000
    %v2145 = vunpack.c.l.b16 %v2001
    %v2146 = vunpack.c.l.b16 %v2002
    %v2147 = vunpack.c.l.b16 %v2003
    %v2148 = vunpack.c.l.b16 %v2004
    %v2149 = vunpack.c.l.b16 %v2005
    %v2150 = vunpack.c.l.b16 %v2006
    %v2151 = vunpack.c.l.b16 %v2007
    %v2152 = vunpack.c.l.b16 %v2008
    %v2153 = vunpack.c.l.b16 %v2009
    %v2154 = vunpack.c.l.b16 %v2010
    %v2155 = vunpack.c.l.b16 %v2011
    %v2156 = vunpack.c.l.b16 %v2012
    %v2157 = vunpack.c.l.b16 %v2013
    %v2158 = vunpack.c.l.b16 %v2014
    %v2159 = vunpack.c.l.b16 %v2015
    %v2160 = vunpack.c.l.b16 %v2016
    %v2161 = vunpack.c.l.b16 %v2017
    %v2162 = vunpack.c.l.b16 %v2018
    %v2163 = vpack.c.b16 %v2132, %v2131
    %v2164 = vpack.c.b16 %v2134, %v2133
    %v2165 = vpack.c.b16 %v2136, %v2135
    %v2166 = vpack.c.b16 %v2138, %v2137
    %v2167 = vpack.c.b16 %v2140, %v2139
    %v2168 = vpack.c.b16 %v2142, %v2141
    %v2169 = vpack.c.b16 %v2144, %v2143
    %v2170 = vpack.c.b16 %v2146, %v2145
    %v2171 = vpack.c.b16 %v2148, %v2147
    %v2172 = vpack.c.b16 %v2150, %v2149
    %v2173 = vpack.c.b16 %v2152, %v2151
    %v2174 = vpack.c.b16 %v2154, %v2153
    %v2175 = vpack.c.b16 %v2156, %v2155
    %v2176 = vpack.c.b16 %v2158, %v2157
    %v2177 = vpack.c.b16 %v2160, %v2159
    %v2178 = vpack.c.b16 %v2162, %v2161
    %2195 = vmatprep.subr.bf16.mxu0 0
    %2196 = vmatpush1.bf16.msra.mxu0 %v2170
    %2197 = vmatprep.subr.bf16.mxu0 0
    %2198 = vmatpush1.bf16.msra.mxu0 %v2169
    %2199 = vmatprep.subr.bf16.mxu0 0
    %2200 = vmatpush1.bf16.msra.mxu0 %v2168
    %2201 = vmatprep.subr.bf16.mxu0 0
    %2202 = vmatpush1.bf16.msra.mxu0 %v2167
    %2203 = vmatprep.subr.bf16.mxu0 0
    %2204 = vmatpush1.bf16.msra.mxu0 %v2166
    %2205 = vmatprep.subr.bf16.mxu0 0
    %2206 = vmatpush1.bf16.msra.mxu0 %v2165
    %2207 = vmatprep.subr.bf16.mxu0 0
    %2208 = vmatpush1.bf16.msra.mxu0 %v2164
    %2209 = vmatprep.subr.bf16.mxu0 0
    %2210 = vmatpush1.bf16.msra.mxu0 %v2163
    %2211 = vmatprep.subr.bf16.mxu0 0
    %2212 = vmatpush2.bf16.msra.mxu0 %v2178
    %2213 = vmatprep.subr.bf16.mxu0 0
    %2214 = vmatpush2.bf16.msra.mxu0 %v2177
    %2215 = vmatprep.subr.bf16.mxu0 0
    %2216 = vmatpush2.bf16.msra.mxu0 %v2176
    %2217 = vmatprep.subr.bf16.mxu0 0
    %2218 = vmatpush2.bf16.msra.mxu0 %v2175
    %2219 = vmatprep.subr.bf16.mxu0 0
    %2220 = vmatpush2.bf16.msra.mxu0 %v2174
    %2221 = vmatprep.subr.bf16.mxu0 0
    %2222 = vmatpush2.bf16.msra.mxu0 %v2173
    %2223 = vmatprep.subr.bf16.mxu0 0
    %2224 = vmatpush2.bf16.msra.mxu0 %v2172
    %2225 = vmatprep.subr.bf16.mxu0 0
    %2226 = vmatpush2.bf16.msra.mxu0 %v2171
    %2227 = vmatprep.mubr.bf16.mxu0 %v2068
    %2228 = vmatmul.mubr.bf16.gmra.mxu0 %v2067
    %v2229 = vpop.f32.mrf.mxu0
    %v2230 = vadd.f32 0.0, %v2229
    %v2231 = vpop.f32.mrf.mxu0
    %v2232 = vpop.f32.mrf.mxu0
    %v2233 = vadd.f32 0.0, %v2232
    %v2234 = vpop.f32.mrf.mxu0
    %2235 = vmatprep.mubr.bf16.mxu0 %v2070
    %2236 = vmatmul.mubr.bf16.gmra.mxu0 %v2069
    %v2237 = vpop.f32.mrf.mxu0
    %v2238 = vadd.f32 0.0, %v2237
    %v2239 = vpop.f32.mrf.mxu0
    %v2240 = vpop.f32.mrf.mxu0
    %v2241 = vadd.f32 0.0, %v2240
    %v2242 = vpop.f32.mrf.mxu0
    %2243 = vmatprep.mubr.bf16.mxu0 %v2072
    %2244 = vmatmul.mubr.bf16.gmra.mxu0 %v2071
    %v2245 = vpop.f32.mrf.mxu0
    %v2246 = vadd.f32 0.0, %v2245
    %v2247 = vpop.f32.mrf.mxu0
    %v2248 = vpop.f32.mrf.mxu0
    %v2249 = vadd.f32 0.0, %v2248
    %v2250 = vpop.f32.mrf.mxu0
    %2251 = vmatprep.mubr.bf16.mxu0 %v2074
    %2252 = vmatmul.mubr.bf16.gmra.mxu0 %v2073
    %v2253 = vpop.f32.mrf.mxu0
    %v2254 = vadd.f32 0.0, %v2253
    %v2255 = vpop.f32.mrf.mxu0
    %v2256 = vpop.f32.mrf.mxu0
    %v2257 = vadd.f32 0.0, %v2256
    %v2258 = vpop.f32.mrf.mxu0
    %2259 = vmatprep.mubr.bf16.mxu0 %v2076
    %2260 = vmatmul.mubr.bf16.gmra.mxu0 %v2075
    %v2261 = vpop.f32.mrf.mxu0
    %v2262 = vadd.f32 0.0, %v2261
    %v2263 = vpop.f32.mrf.mxu0
    %v2264 = vpop.f32.mrf.mxu0
    %v2265 = vadd.f32 0.0, %v2264
    %v2266 = vpop.f32.mrf.mxu0
    %2267 = vmatprep.mubr.bf16.mxu0 %v2078
    %2268 = vmatmul.mubr.bf16.gmra.mxu0 %v2077
    %v2269 = vpop.f32.mrf.mxu0
    %v2270 = vadd.f32 0.0, %v2269
    %v2271 = vpop.f32.mrf.mxu0
    %v2272 = vpop.f32.mrf.mxu0
    %v2273 = vadd.f32 0.0, %v2272
    %v2274 = vpop.f32.mrf.mxu0
    %2275 = vmatprep.mubr.bf16.mxu0 %v2080
    %2276 = vmatmul.mubr.bf16.gmra.mxu0 %v2079
    %v2277 = vpop.f32.mrf.mxu0
    %v2278 = vadd.f32 0.0, %v2277
    %v2279 = vpop.f32.mrf.mxu0
    %v2280 = vpop.f32.mrf.mxu0
    %v2281 = vadd.f32 0.0, %v2280
    %v2282 = vpop.f32.mrf.mxu0
    %2283 = vmatprep.mubr.bf16.mxu0 %v2082
    %2284 = vmatmul.mubr.bf16.gmra.mxu0 %v2081
    %v2285 = vpop.f32.mrf.mxu0
    %v2286 = vadd.f32 0.0, %v2285
    %v2287 = vpop.f32.mrf.mxu0
    %v2288 = vpop.f32.mrf.mxu0
    %v2289 = vadd.f32 0.0, %v2288
    %v2290 = vpop.f32.mrf.mxu0
    %2291 = vdwg.mxu0
    %v2292 = vld [vmem:[%s10] sm:$0x1]
    %v2294 = vlaneseq
    %v2295 = vshrl.u32 %v2294, 7
    %v2296 = vsub.s32 0, %v2295
    %v2297 = vrot.slane %v2292, %v2296
    %v2299 = vmul.f32 %v2230, %v2297
    %v2300 = vmul.f32 %v2233, %v2297
    %v2301 = vmul.f32 %v2238, %v2297
    %v2302 = vmul.f32 %v2241, %v2297
    %v2303 = vmul.f32 %v2246, %v2297
    %v2304 = vmul.f32 %v2249, %v2297
    %v2305 = vmul.f32 %v2254, %v2297
    %v2306 = vmul.f32 %v2257, %v2297
    %v2307 = vmul.f32 %v2262, %v2297
    %v2308 = vmul.f32 %v2265, %v2297
    %v2309 = vmul.f32 %v2270, %v2297
    %v2310 = vmul.f32 %v2273, %v2297
    %v2311 = vmul.f32 %v2278, %v2297
    %v2312 = vmul.f32 %v2281, %v2297
    %v2313 = vmul.f32 %v2286, %v2297
    %v2314 = vmul.f32 %v2289, %v2297
    %v2315 = vld [vmem:[%s11] sm:$0x1]
    %v2317 = vlaneseq
    %v2318 = vshrl.u32 %v2317, 7
    %v2319 = vsub.s32 0, %v2318
    %v2320 = vrot.slane %v2315, %v2319
    %v2322 = vadd.f32 %v2299, %v2320
    %v2323 = vadd.f32 %v2300, %v2320
    %v2324 = vadd.f32 %v2301, %v2320
    %v2325 = vadd.f32 %v2302, %v2320
    %v2326 = vadd.f32 %v2303, %v2320
    %v2327 = vadd.f32 %v2304, %v2320
    %v2328 = vadd.f32 %v2305, %v2320
    %v2329 = vadd.f32 %v2306, %v2320
    %v2330 = vadd.f32 %v2307, %v2320
    %v2331 = vadd.f32 %v2308, %v2320
    %v2332 = vadd.f32 %v2309, %v2320
    %v2333 = vadd.f32 %v2310, %v2320
    %v2334 = vadd.f32 %v2311, %v2320
    %v2335 = vadd.f32 %v2312, %v2320
    %v2336 = vadd.f32 %v2313, %v2320
    %v2337 = vadd.f32 %v2314, %v2320
    %v2338 = vmul.f32 %v2322, %v821
    %v2339 = vmul.f32 %v2323, %v826
    %v2340 = vmul.f32 %v2324, %v831
    %v2341 = vmul.f32 %v2325, %v836
    %v2342 = vmul.f32 %v2326, %v841
    %v2343 = vmul.f32 %v2327, %v846
    %v2344 = vmul.f32 %v2328, %v851
    %v2345 = vmul.f32 %v2329, %v856
    %v2346 = vmul.f32 %v2330, %v861
    %v2347 = vmul.f32 %v2331, %v866
    %v2348 = vmul.f32 %v2332, %v871
    %v2349 = vmul.f32 %v2333, %v876
    %v2350 = vmul.f32 %v2334, %v881
    %v2351 = vmul.f32 %v2335, %v886
    %v2352 = vmul.f32 %v2336, %v891
    %v2353 = vmul.f32 %v2337, %v896
    %2354 = vst [vmem:[#allocation11] sm:$0xff] %v2338
    %2355 = vst [vmem:[#allocation11 + $0x8] sm:$0xff] %v2339
    %2356 = vst [vmem:[#allocation11 + $0x10] sm:$0xff] %v2340
    %2357 = vst [vmem:[#allocation11 + $0x18] sm:$0xff] %v2341
    %2358 = vst [vmem:[#allocation11 + $0x20] sm:$0xff] %v2342
    %2359 = vst [vmem:[#allocation11 + $0x28] sm:$0xff] %v2343
    %2360 = vst [vmem:[#allocation11 + $0x30] sm:$0xff] %v2344
    %2361 = vst [vmem:[#allocation11 + $0x38] sm:$0xff] %v2345
    %2362 = vst [vmem:[#allocation11 + $0x40] sm:$0xff] %v2346
    %2363 = vst [vmem:[#allocation11 + $0x48] sm:$0xff] %v2347
    %2364 = vst [vmem:[#allocation11 + $0x50] sm:$0xff] %v2348
    %2365 = vst [vmem:[#allocation11 + $0x58] sm:$0xff] %v2349
    %2366 = vst [vmem:[#allocation11 + $0x60] sm:$0xff] %v2350
    %2367 = vst [vmem:[#allocation11 + $0x68] sm:$0xff] %v2351
    %2368 = vst [vmem:[#allocation11 + $0x70] sm:$0xff] %v2352
    %2369 = vst [vmem:[#allocation11 + $0x78] sm:$0xff] %v2353
    // Predicated region
    $region66: #{tpu_custom_call.1} parent=1 // pred_check
      _
    $region67: #{tpu_custom_call.1} parent=1 // pred_check_branch
      %2371 = sbr.rel (0) target = $region69
    $region68: #{tpu_custom_call.1} parent=1 // pred_region
      %s2373 = ssub.s32 2048, 2048
      %2374 = vsyncadd [#allocation5], %s2373
      %s2375 = sshll.u32 [#allocation11], 4
      %s2376 = int_to_ptr.vmem [resolvable:$true] %s2375
      %2381 = dma.vmem_to_hbm [thread:$0]  %s2376, 2048, %s12, [#allocation5], 128, 128, 8
    $region69: #{tpu_custom_call.1} parent=1 // pred_fallthru
      _
    // Predicated region
    $region70: #{tpu_custom_call.1} parent=1 // pred_check
      _
    $region71: #{tpu_custom_call.1} parent=1 // pred_check_branch
      %2383 = sbr.rel (0) target = $region73
    $region72: #{tpu_custom_call.1} parent=1 // pred_region
      %2384 = dma.done [#allocation5], 2048
    $region73: #{tpu_custom_call.1} parent=1 // pred_fallthru
      _
    %2385 = vsyncpa [#allocation4], 1
    %2386 = vsyncpa [#allocation7], 1
    %2387 = vsyncpa [#allocation10], 1
    %2388 = vsyncpa [#allocation5], 1

</llo_original>
